<compile_context>
chip_gen: v7x
topology: tpu7x:2x2x1
jax: 0.10.0
libtpu: 0.0.40
codegen_flags: <defaults>
</compile_context>

<pallas_src>
import jax
import jax.numpy as jnp
from jax.experimental import pallas as pl
from jax.experimental.pallas import tpu as pltpu

_LANE = 128
_SUBLANE = 8


def _round_up(n, m):
    return (n + m - 1) // m * m


def _pad_axis(a, axis, target):
    pad = target - a.shape[axis]
    if pad == 0:
        return a
    widths = [(0, 0)] * a.ndim
    widths[axis] = (0, pad)
    return jnp.pad(a, widths)


def _vmem_limit_bytes():
    """Generation-aware VMEM budget: ~3/4 of physical (≈48 MiB v7x, ≈96 MiB v5e/v6e)."""
    try:
        info = pltpu.get_tpu_info()
        cap = int(getattr(info, "vmem_capacity_bytes", 0) or 0)
        if cap > 0:
            return max(32 << 20, min((cap * 3) // 4, 112 << 20))
    except Exception:
        pass
    return 32 << 20


# --------------------------------------------------------------------------
# Fused single-pass kernel: y1 resident in VMEM scratch, two-phase grid.
#   phase 0: z = x@W1 (bf16 MXU, f32 acc), accumulate sum/sumsq of z,
#            store y1 = z + b1 (bf16) into the resident scratch.
#   phase 1 (i==0): fold stats -> per-feature scale/shift (rsqrt on EUP).
#   phase 1: out = relu(y1*scale + shift) @ W2 + b2.
# --------------------------------------------------------------------------
def _make_fused_kernel(tm, hidden_p, inv_m, eps):
    def kernel(x_ref, w1_ref, b1_ref, g_ref, bt_ref, w2_ref, b2_ref,
               out_ref, y1_scr, sum_scr, sq_scr, scale_scr, shift_scr):
        phase = pl.program_id(0)
        i = pl.program_id(1)

        @pl.when((phase == 0) & (i == 0))
        def _():
            sum_scr[...] = jnp.zeros_like(sum_scr)
            sq_scr[...] = jnp.zeros_like(sq_scr)

        @pl.when(phase == 0)
        def _():
            xb = x_ref[...].astype(jnp.bfloat16)          # in-kernel VPU cast
            z = jnp.dot(xb, w1_ref[...], preferred_element_type=jnp.float32)
            # Pre-bias stats: padded (all-zero) rows contribute exactly 0, and
            # removing the bias avoids E[y^2]-mean^2 cancellation.
            z3 = z.reshape(tm // _SUBLANE, _SUBLANE, hidden_p)
            sum_scr[...] += jnp.sum(z3, axis=0)
            sq_scr[...] += jnp.sum(z3 * z3, axis=0)
            y1_scr[i] = (z + b1_ref[...]).astype(y1_scr.dtype)

        @pl.when((phase == 1) & (i == 0))
        def _():
            mean_z = jnp.sum(sum_scr[...], axis=0, keepdims=True) * inv_m
            ex2 = jnp.sum(sq_scr[...], axis=0, keepdims=True) * inv_m
            var = jnp.maximum(ex2 - mean_z * mean_z, 0.0)  # biased, clamped
            inv = jax.lax.rsqrt(var + eps)
            mean_y = mean_z + b1_ref[...]
            scale_scr[...] = g_ref[...] * inv
            shift_scr[...] = bt_ref[...] - mean_y * g_ref[...] * inv

        @pl.when(phase == 1)
        def _():
            y = y1_scr[i].astype(jnp.float32)
            yr = jnp.maximum(y * scale_scr[...] + shift_scr[...], 0.0)
            out_ref[...] = (
                jnp.dot(yr.astype(w2_ref.dtype), w2_ref[...],
                        preferred_element_type=jnp.float32) + b2_ref[...]
            ).astype(out_ref.dtype)

    return kernel


# --------------------------------------------------------------------------
# Two-pass fallback (y1 too large for VMEM residency).
# --------------------------------------------------------------------------
def _linear1_stats_kernel(x_ref, w1_ref, b1_ref, y1_ref, sum_ref, sq_ref):
    xb = x_ref[...].astype(jnp.bfloat16)                  # in-kernel VPU cast
    z = jnp.dot(xb, w1_ref[...], preferred_element_type=jnp.float32)
    y1_ref[...] = (z + b1_ref[...]).astype(y1_ref.dtype)

    @pl.when(pl.program_id(1) == 0)
    def _():
        sum_ref[...] = jnp.zeros_like(sum_ref)
        sq_ref[...] = jnp.zeros_like(sq_ref)

    tm, hid = z.shape
    z3 = z.reshape(tm // _SUBLANE, _SUBLANE, hid)
    sum_ref[...] += jnp.sum(z3, axis=0)[None]
    sq_ref[...] += jnp.sum(z3 * z3, axis=0)[None]


def _bn_relu_linear2_kernel(y1_ref, scale_ref, shift_ref, w2_ref, b2_ref, out_ref):
    y = y1_ref[...].astype(jnp.float32)
    yr = jnp.maximum(y * scale_ref[...] + shift_ref[...], 0.0)
    out_ref[...] = (
        jnp.dot(yr.astype(w2_ref.dtype), w2_ref[...], preferred_element_type=jnp.float32)
        + b2_ref[...]
    ).astype(out_ref.dtype)


# --------------------------------------------------------------------------
# Wrapper
# --------------------------------------------------------------------------
def prediction_mlp_forward(x, params, *, tile_m=512, eps=1e-5,
                           out_dtype=jnp.float32, force_two_pass=False):
    """x: (N, H, W, in_dim) float32, channels-last (== nn.Linear layout)."""
    N, H, W, c_in = x.shape
    hidden = params["w1"].shape[1]
    out_dim = params["w2"].shape[1]
    M = N * H * W

    # ---- lane-pad feature dims (lane-dense, unmasked vector stores) ----
    c_in_p = _round_up(c_in, _LANE)
    hidden_p = _round_up(hidden, _LANE)
    out_p = _round_up(out_dim, _LANE)

    # ---- row tiling: big tiles, >=2 tiles when possible, pad M up ----
    tm = min(_round_up(tile_m, _SUBLANE),
             _round_up(max((M + 1) // 2, _SUBLANE), _SUBLANE))
    M_pad = _round_up(M, tm)
    num_tiles = M_pad // tm

    # x stays f32 (cast to bf16 inside the kernel); zero row/col padding only.
    x2d = _pad_axis(_pad_axis(x.reshape(M, c_in).astype(jnp.float32), 1, c_in_p), 0, M_pad)
    w1p = _pad_axis(_pad_axis(params["w1"].astype(jnp.float32), 0, c_in_p), 1, hidden_p
                    ).astype(jnp.bfloat16)
    b1p = _pad_axis(params["b1"].reshape(1, hidden).astype(jnp.float32), 1, hidden_p)
    gmp = _pad_axis(params["gamma"].reshape(1, hidden).astype(jnp.float32), 1, hidden_p)
    btp = _pad_axis(params["beta"].reshape(1, hidden).astype(jnp.float32), 1, hidden_p)
    w2p = _pad_axis(_pad_axis(params["w2"].astype(jnp.float32), 0, hidden_p), 1, out_p
                    ).astype(jnp.bfloat16)
    b2p = _pad_axis(params["b2"].reshape(1, out_dim).astype(jnp.float32), 1, out_p)

    vmem_limit = _vmem_limit_bytes()
    inv_m = 1.0 / float(M)       # divide by the TRUE row count (padded rows sum to 0)
    eps = float(eps)

    # ---- fused path fit check: resident y1 + working set within VMEM budget ----
    y1_bytes = M_pad * hidden_p * 2                                   # bf16 scratch
    working_bytes = (2 * tm * c_in_p * 4 + 2 * tm * out_p * 4         # x / out dbl-buf
                     + 2 * (c_in_p * hidden_p + hidden_p * out_p) * 2  # weights
                     + 4 * tm * hidden_p * 4 + (64 << 10))             # temporaries
    use_fused = (not force_two_pass) and (y1_bytes + working_bytes + (4 << 20) <= vmem_limit)

    nt = num_tiles
    if use_fused:
        kern = _make_fused_kernel(tm, hidden_p, inv_m, eps)
        out2d = pl.pallas_call(
            kern,
            out_shape=jax.ShapeDtypeStruct((M_pad, out_p), out_dtype),
            grid=(2, num_tiles),
            in_specs=[
                # x is only consumed in phase 0; during phase 1 the block index
                # stays pinned at the last-fetched tile -> no redundant DMA.
                pl.BlockSpec((tm, c_in_p), lambda p, i: ((1 - p) * i + p * (nt - 1), 0)),
                pl.BlockSpec((c_in_p, hidden_p), lambda p, i: (0, 0)),
                pl.BlockSpec((1, hidden_p), lambda p, i: (0, 0)),
                pl.BlockSpec((1, hidden_p), lambda p, i: (0, 0)),
                pl.BlockSpec((1, hidden_p), lambda p, i: (0, 0)),
                pl.BlockSpec((hidden_p, out_p), lambda p, i: (0, 0)),
                pl.BlockSpec((1, out_p), lambda p, i: (0, 0)),
            ],
            # Output blocks only advance during phase 1 -> no garbage writeback
            # of the untouched phase-0 buffer.
            out_specs=pl.BlockSpec((tm, out_p), lambda p, i: (p * i, 0)),
            scratch_shapes=[
                pltpu.VMEM((num_tiles, tm, hidden_p), jnp.bfloat16),   # resident y1
                pltpu.VMEM((_SUBLANE, hidden_p), jnp.float32),         # sum partials
                pltpu.VMEM((_SUBLANE, hidden_p), jnp.float32),         # sumsq partials
                pltpu.VMEM((1, hidden_p), jnp.float32),                # scale
                pltpu.VMEM((1, hidden_p), jnp.float32),                # shift
            ],
            compiler_params=pltpu.CompilerParams(
                dimension_semantics=("arbitrary", "arbitrary"),
                vmem_limit_bytes=vmem_limit),
        )(x2d, w1p, b1p, gmp, btp, w2p, b2p)
    else:
        # ---- pass A: linear1 + per-split batch-stat partials ----
        n_split = 2 if (num_tiles >= 2 and num_tiles % 2 == 0) else 1
        tps = num_tiles // n_split

        y1, ssum, ssq = pl.pallas_call(
            _linear1_stats_kernel,
            out_shape=(
                jax.ShapeDtypeStruct((M_pad, hidden_p), jnp.bfloat16),
                jax.ShapeDtypeStruct((n_split, _SUBLANE, hidden_p), jnp.float32),
                jax.ShapeDtypeStruct((n_split, _SUBLANE, hidden_p), jnp.float32),
            ),
            grid=(n_split, tps),
            in_specs=[
                pl.BlockSpec((tm, c_in_p), lambda c, i, t=tps: (c * t + i, 0)),
                pl.BlockSpec((c_in_p, hidden_p), lambda c, i: (0, 0)),
                pl.BlockSpec((1, hidden_p), lambda c, i: (0, 0)),
            ],
            out_specs=(
                pl.BlockSpec((tm, hidden_p), lambda c, i, t=tps: (c * t + i, 0)),
                pl.BlockSpec((1, _SUBLANE, hidden_p), lambda c, i: (c, 0, 0)),
                pl.BlockSpec((1, _SUBLANE, hidden_p), lambda c, i: (c, 0, 0)),
            ),
            compiler_params=pltpu.CompilerParams(
                dimension_semantics=("parallel", "arbitrary"),
                vmem_limit_bytes=vmem_limit),
        )(x2d, w1p, b1p)

        # ---- fold batch statistics (tiny, plain JAX) ----
        mean_z = ssum.sum(axis=(0, 1)) * inv_m
        ex2 = ssq.sum(axis=(0, 1)) * inv_m
        var = jnp.maximum(ex2 - mean_z * mean_z, 0.0)
        inv = jax.lax.rsqrt(var + jnp.float32(eps))
        g = gmp.reshape(hidden_p)
        mean_y = mean_z + b1p.reshape(hidden_p)
        scale = (g * inv).reshape(1, hidden_p)
        shift = (btp.reshape(hidden_p) - mean_y * g * inv).reshape(1, hidden_p)

        # ---- pass B: BN affine + ReLU + linear2 ----
        out2d = pl.pallas_call(
            _bn_relu_linear2_kernel,
            out_shape=jax.ShapeDtypeStruct((M_pad, out_p), out_dtype),
            grid=(num_tiles,),
            in_specs=[
                pl.BlockSpec((tm, hidden_p), lambda i: (i, 0)),
                pl.BlockSpec((1, hidden_p), lambda i: (0, 0)),
                pl.BlockSpec((1, hidden_p), lambda i: (0, 0)),
                pl.BlockSpec((hidden_p, out_p), lambda i: (0, 0)),
                pl.BlockSpec((1, out_p), lambda i: (0, 0)),
            ],
            out_specs=pl.BlockSpec((tm, out_p), lambda i: (i, 0)),
            compiler_params=pltpu.CompilerParams(
                dimension_semantics=("parallel",),
                vmem_limit_bytes=vmem_limit),
        )(y1, scale, shift, w2p, b2p)

    return out2d[:M, :out_dim].reshape(N, H, W, out_dim)


if __name__ == "__main__":
    # Module-default feature dims (in=256, hidden=128, out=256); small batch/spatial.
    # M = 4*16*16 = 1024 -> tile_m=512, 2 row tiles; y1 easily VMEM-resident, so the
    # fused path is exercised; the two-pass fallback is checked explicitly as well.
    N, H, W = 4, 16, 16
    in_dim, hidden_dim, out_dim = 256, 128, 256

    key = jax.random.PRNGKey(0)
    kx, k1, k2, k3, k4 = jax.random.split(key, 5)
    x = jax.random.normal(kx, (N, H, W, in_dim), jnp.float32)

    # Deterministic synthetic parameters (same shapes as the nn.Module's params;
    # w1/w2 stored transposed relative to torch: (in_features, out_features)).
    params = dict(
        w1=jax.random.normal(k1, (in_dim, hidden_dim), jnp.float32) / jnp.sqrt(in_dim),
        b1=jax.random.normal(k2, (1, hidden_dim), jnp.float32) * 0.01,
        gamma=jnp.ones((1, hidden_dim), jnp.float32),   # BatchNorm2d weight init
        beta=jnp.zeros((1, hidden_dim), jnp.float32),   # BatchNorm2d bias init
        w2=jax.random.normal(k3, (hidden_dim, out_dim), jnp.float32) / jnp.sqrt(hidden_dim),
        b2=jax.random.normal(k4, (1, out_dim), jnp.float32) * 0.01,
    )

    out_fused = jax.block_until_ready(prediction_mlp_forward(x, params))
    out_2pass = jax.block_until_ready(
        prediction_mlp_forward(x, params, force_two_pass=True))

    # Plain-JAX f32 reference (training-mode BN with biased variance).
    x2d = x.reshape(-1, in_dim)
    y1 = x2d @ params["w1"] + params["b1"]
    mean = y1.mean(0, keepdims=True)
    var = ((y1 - mean) ** 2).mean(0, keepdims=True)
    yn = (y1 - mean) / jnp.sqrt(var + 1e-5) * params["gamma"] + params["beta"]
    ref = (jnp.maximum(yn, 0.0) @ params["w2"] + params["b2"]).reshape(N, H, W, out_dim)

    # bf16 MXU operands + bf16 y1 storage -> compare at bf16-level tolerance.
    err_f = float(jnp.max(jnp.abs(out_fused - ref)))
    err_2 = float(jnp.max(jnp.abs(out_2pass - ref)))
    assert jnp.allclose(out_fused, ref, atol=1e-1, rtol=1e-1), f"fused max abs err = {err_f}"
    assert jnp.allclose(out_2pass, ref, atol=1e-1, rtol=1e-1), f"2pass max abs err = {err_2}"
    print("KERNEL_OK")
</pallas_src>

<mosaic_0001>
module attributes {stable_mosaic.version = 11 : i64} {
  func.func @kernel(%arg0: i32, %arg1: i32, %arg2: memref<512x256xf32, #tpu.memory_space<vmem>>, %arg3: memref<256x128xbf16, #tpu.memory_space<vmem>>, %arg4: memref<1x128xf32, #tpu.memory_space<vmem>>, %arg5: memref<1x128xf32, #tpu.memory_space<vmem>>, %arg6: memref<1x128xf32, #tpu.memory_space<vmem>>, %arg7: memref<128x256xbf16, #tpu.memory_space<vmem>>, %arg8: memref<1x256xf32, #tpu.memory_space<vmem>>, %arg9: memref<512x256xf32, #tpu.memory_space<vmem>>, %arg10: memref<2x512x128xbf16, #tpu.memory_space<vmem>>, %arg11: memref<8x128xf32, #tpu.memory_space<vmem>>, %arg12: memref<8x128xf32, #tpu.memory_space<vmem>>, %arg13: memref<1x128xf32, #tpu.memory_space<vmem>>, %arg14: memref<1x128xf32, #tpu.memory_space<vmem>>) attributes {dimension_semantics = [#tpu.dimension_semantics<arbitrary>, #tpu.dimension_semantics<arbitrary>], iteration_bounds = array<i64: 2, 2>, scalar_prefetch = 0 : i64, scratch_operands = 5 : i64, tpu.core_type = #tpu.core_type<tc>, window_params = [{transform_indices = @transform_0, window_bounds = array<i64: 512, 256>}, {pipeline_mode = #tpu.pipeline_mode<synchronous>, transform_indices = @transform_1, window_bounds = array<i64: 256, 128>}, {pipeline_mode = #tpu.pipeline_mode<synchronous>, transform_indices = @transform_2, window_bounds = array<i64: 1, 128>}, {pipeline_mode = #tpu.pipeline_mode<synchronous>, transform_indices = @transform_3, window_bounds = array<i64: 1, 128>}, {pipeline_mode = #tpu.pipeline_mode<synchronous>, transform_indices = @transform_4, window_bounds = array<i64: 1, 128>}, {pipeline_mode = #tpu.pipeline_mode<synchronous>, transform_indices = @transform_5, window_bounds = array<i64: 128, 256>}, {pipeline_mode = #tpu.pipeline_mode<synchronous>, transform_indices = @transform_6, window_bounds = array<i64: 1, 256>}, {transform_indices = @transform_7, window_bounds = array<i64: 512, 256>}]} {
    %c0_i32 = arith.constant 0 : i32
    %0 = arith.cmpi eq, %arg0, %c0_i32 : i32
    %c0_i32_0 = arith.constant 0 : i32
    %1 = arith.cmpi eq, %arg1, %c0_i32_0 : i32
    %2 = arith.andi %0, %1 : i1
    %3 = arith.extui %2 : i1 to i32
    %c0_i32_1 = arith.constant 0 : i32
    %4 = arith.cmpi ne, %3, %c0_i32_1 : i32
    scf.if %4 {
      %cst = arith.constant 0.000000e+00 : f32
      %16 = vector.broadcast %cst : f32 to vector<8x128xf32>
      %c0 = arith.constant 0 : index
      %c0_8 = arith.constant 0 : index
      %17 = vector.load %arg11[%c0, %c0_8] : memref<8x128xf32, #tpu.memory_space<vmem>>, vector<8x128xf32>
      tpu.vector_store %arg11[%c0, %c0_8], %16 {strides = array<i32>} : memref<8x128xf32, #tpu.memory_space<vmem>>, vector<8x128xf32>,
      %cst_9 = arith.constant 0.000000e+00 : f32
      %18 = vector.broadcast %cst_9 : f32 to vector<8x128xf32>
      %c0_10 = arith.constant 0 : index
      %c0_11 = arith.constant 0 : index
      %19 = vector.load %arg12[%c0_10, %c0_11] : memref<8x128xf32, #tpu.memory_space<vmem>>, vector<8x128xf32>
      tpu.vector_store %arg12[%c0_10, %c0_11], %18 {strides = array<i32>} : memref<8x128xf32, #tpu.memory_space<vmem>>, vector<8x128xf32>,
    } else {
    }
    %c0_i32_2 = arith.constant 0 : i32
    %5 = arith.cmpi eq, %arg0, %c0_i32_2 : i32
    %6 = arith.extui %5 : i1 to i32
    %c0_i32_3 = arith.constant 0 : i32
    %7 = arith.cmpi ne, %6, %c0_i32_3 : i32
    scf.if %7 {
      %c0 = arith.constant 0 : index
      %c0_8 = arith.constant 0 : index
      %16 = vector.load %arg2[%c0, %c0_8] : memref<512x256xf32, #tpu.memory_space<vmem>>, vector<512x256xf32>
      %17 = arith.truncf %16 : vector<512x256xf32> to vector<512x256xbf16>
      %c0_9 = arith.constant 0 : index
      %c0_10 = arith.constant 0 : index
      %18 = vector.load %arg3[%c0_9, %c0_10] : memref<256x128xbf16, #tpu.memory_space<vmem>>, vector<256x128xbf16>
      %cst = arith.constant dense<0.000000e+00> : vector<512x128xf32>
      %19 = tpu.matmul %17, %18, %cst {dimension_numbers = #tpu.dot_dimension_numbers<[1], [0], [0], [1], [0, 0, 1, 1], [], []>} : vector<512x256xbf16>, vector<256x128xbf16>, vector<512x128xf32> -> vector<512x128xf32>
      %20 = vector.shape_cast %19 : vector<512x128xf32> to vector<64x8x128xf32>
      %c0_11 = arith.constant 0 : index
      %c0_12 = arith.constant 0 : index
      %21 = vector.load %arg11[%c0_11, %c0_12] : memref<8x128xf32, #tpu.memory_space<vmem>>, vector<8x128xf32>
      %cst_13 = arith.constant dense<0.000000e+00> : vector<8x128xf32>
      %22 = vector.multi_reduction <add>, %20, %cst_13 [0] : vector<64x8x128xf32> to vector<8x128xf32>
      %23 = arith.addf %21, %22 : vector<8x128xf32>
      %c0_14 = arith.constant 0 : index
      %c0_15 = arith.constant 0 : index
      %24 = vector.load %arg11[%c0_14, %c0_15] : memref<8x128xf32, #tpu.memory_space<vmem>>, vector<8x128xf32>
      tpu.vector_store %arg11[%c0_14, %c0_15], %23 {strides = array<i32>} : memref<8x128xf32, #tpu.memory_space<vmem>>, vector<8x128xf32>,
      %c0_16 = arith.constant 0 : index
      %c0_17 = arith.constant 0 : index
      %25 = vector.load %arg12[%c0_16, %c0_17] : memref<8x128xf32, #tpu.memory_space<vmem>>, vector<8x128xf32>
      %26 = arith.mulf %20, %20 : vector<64x8x128xf32>
      %cst_18 = arith.constant dense<0.000000e+00> : vector<8x128xf32>
      %27 = vector.multi_reduction <add>, %26, %cst_18 [0] : vector<64x8x128xf32> to vector<8x128xf32>
      %28 = arith.addf %25, %27 : vector<8x128xf32>
      %c0_19 = arith.constant 0 : index
      %c0_20 = arith.constant 0 : index
      %29 = vector.load %arg12[%c0_19, %c0_20] : memref<8x128xf32, #tpu.memory_space<vmem>>, vector<8x128xf32>
      tpu.vector_store %arg12[%c0_19, %c0_20], %28 {strides = array<i32>} : memref<8x128xf32, #tpu.memory_space<vmem>>, vector<8x128xf32>,
      %c0_21 = arith.constant 0 : index
      %c0_22 = arith.constant 0 : index
      %30 = vector.load %arg4[%c0_21, %c0_22] : memref<1x128xf32, #tpu.memory_space<vmem>>, vector<1x128xf32>
      %31 = vector.broadcast %30 : vector<1x128xf32> to vector<512x128xf32>
      %32 = arith.addf %19, %31 : vector<512x128xf32>
      %33 = arith.truncf %32 : vector<512x128xf32> to vector<512x128xbf16>
      %34 = arith.index_cast %arg1 : i32 to index
      %c0_23 = arith.constant 0 : index
      %c0_24 = arith.constant 0 : index
      %35 = vector.load %arg10[%34, %c0_23, %c0_24] : memref<2x512x128xbf16, #tpu.memory_space<vmem>>, vector<1x512x128xbf16>
      %36 = vector.shape_cast %35 : vector<1x512x128xbf16> to vector<512x128xbf16>
      %37 = vector.shape_cast %33 : vector<512x128xbf16> to vector<1x512x128xbf16>
      tpu.vector_store %arg10[%34, %c0_23, %c0_24], %37 {strides = array<i32>} : memref<2x512x128xbf16, #tpu.memory_space<vmem>>, vector<1x512x128xbf16>,
    } else {
    }
    %c1_i32 = arith.constant 1 : i32
    %8 = arith.cmpi eq, %arg0, %c1_i32 : i32
    %c0_i32_4 = arith.constant 0 : i32
    %9 = arith.cmpi eq, %arg1, %c0_i32_4 : i32
    %10 = arith.andi %8, %9 : i1
    %11 = arith.extui %10 : i1 to i32
    %c0_i32_5 = arith.constant 0 : i32
    %12 = arith.cmpi ne, %11, %c0_i32_5 : i32
    scf.if %12 {
      %c0 = arith.constant 0 : index
      %c0_8 = arith.constant 0 : index
      %16 = vector.load %arg11[%c0, %c0_8] : memref<8x128xf32, #tpu.memory_space<vmem>>, vector<8x128xf32>
      %cst = arith.constant dense<0.000000e+00> : vector<128xf32>
      %17 = vector.multi_reduction <add>, %16, %cst [0] : vector<8x128xf32> to vector<128xf32>
      %18 = vector.shape_cast %17 : vector<128xf32> to vector<1x128xf32>
      %cst_9 = arith.constant 9.765625E-4 : f32
      %19 = vector.broadcast %cst_9 : f32 to vector<1x128xf32>
      %20 = arith.mulf %18, %19 : vector<1x128xf32>
      %c0_10 = arith.constant 0 : index
      %c0_11 = arith.constant 0 : index
      %21 = vector.load %arg12[%c0_10, %c0_11] : memref<8x128xf32, #tpu.memory_space<vmem>>, vector<8x128xf32>
      %cst_12 = arith.constant dense<0.000000e+00> : vector<128xf32>
      %22 = vector.multi_reduction <add>, %21, %cst_12 [0] : vector<8x128xf32> to vector<128xf32>
      %23 = vector.shape_cast %22 : vector<128xf32> to vector<1x128xf32>
      %cst_13 = arith.constant 9.765625E-4 : f32
      %24 = vector.broadcast %cst_13 : f32 to vector<1x128xf32>
      %25 = arith.mulf %23, %24 : vector<1x128xf32>
      %26 = arith.mulf %20, %20 : vector<1x128xf32>
      %27 = arith.subf %25, %26 : vector<1x128xf32>
      %cst_14 = arith.constant 0.000000e+00 : f32
      %28 = vector.broadcast %cst_14 : f32 to vector<1x128xf32>
      %29 = arith.maximumf %27, %28 : vector<1x128xf32>
      %cst_15 = arith.constant 9.99999974E-6 : f32
      %30 = vector.broadcast %cst_15 : f32 to vector<1x128xf32>
      %31 = arith.addf %29, %30 : vector<1x128xf32>
      %32 = math.rsqrt %31 : vector<1x128xf32>
      %c0_16 = arith.constant 0 : index
      %c0_17 = arith.constant 0 : index
      %33 = vector.load %arg4[%c0_16, %c0_17] : memref<1x128xf32, #tpu.memory_space<vmem>>, vector<1x128xf32>
      %34 = arith.addf %20, %33 : vector<1x128xf32>
      %c0_18 = arith.constant 0 : index
      %c0_19 = arith.constant 0 : index
      %35 = vector.load %arg5[%c0_18, %c0_19] : memref<1x128xf32, #tpu.memory_space<vmem>>, vector<1x128xf32>
      %36 = arith.mulf %35, %32 : vector<1x128xf32>
      %c0_20 = arith.constant 0 : index
      %c0_21 = arith.constant 0 : index
      %37 = vector.load %arg13[%c0_20, %c0_21] : memref<1x128xf32, #tpu.memory_space<vmem>>, vector<1x128xf32>
      tpu.vector_store %arg13[%c0_20, %c0_21], %36 {strides = array<i32>} : memref<1x128xf32, #tpu.memory_space<vmem>>, vector<1x128xf32>,
      %c0_22 = arith.constant 0 : index
      %c0_23 = arith.constant 0 : index
      %38 = vector.load %arg6[%c0_22, %c0_23] : memref<1x128xf32, #tpu.memory_space<vmem>>, vector<1x128xf32>
      %c0_24 = arith.constant 0 : index
      %c0_25 = arith.constant 0 : index
      %39 = vector.load %arg5[%c0_24, %c0_25] : memref<1x128xf32, #tpu.memory_space<vmem>>, vector<1x128xf32>
      %40 = arith.mulf %34, %39 : vector<1x128xf32>
      %41 = arith.mulf %40, %32 : vector<1x128xf32>
      %42 = arith.subf %38, %41 : vector<1x128xf32>
      %c0_26 = arith.constant 0 : index
      %c0_27 = arith.constant 0 : index
      %43 = vector.load %arg14[%c0_26, %c0_27] : memref<1x128xf32, #tpu.memory_space<vmem>>, vector<1x128xf32>
      tpu.vector_store %arg14[%c0_26, %c0_27], %42 {strides = array<i32>} : memref<1x128xf32, #tpu.memory_space<vmem>>, vector<1x128xf32>,
    } else {
    }
    %c1_i32_6 = arith.constant 1 : i32
    %13 = arith.cmpi eq, %arg0, %c1_i32_6 : i32
    %14 = arith.extui %13 : i1 to i32
    %c0_i32_7 = arith.constant 0 : i32
    %15 = arith.cmpi ne, %14, %c0_i32_7 : i32
    scf.if %15 {
      %16 = arith.index_cast %arg1 : i32 to index
      %c0 = arith.constant 0 : index
      %c0_8 = arith.constant 0 : index
      %17 = vector.load %arg10[%16, %c0, %c0_8] : memref<2x512x128xbf16, #tpu.memory_space<vmem>>, vector<1x512x128xbf16>
      %18 = vector.shape_cast %17 : vector<1x512x128xbf16> to vector<512x128xbf16>
      %19 = arith.extf %18 : vector<512x128xbf16> to vector<512x128xf32>
      %c0_9 = arith.constant 0 : index
      %c0_10 = arith.constant 0 : index
      %20 = vector.load %arg13[%c0_9, %c0_10] : memref<1x128xf32, #tpu.memory_space<vmem>>, vector<1x128xf32>
      %21 = vector.broadcast %20 : vector<1x128xf32> to vector<512x128xf32>
      %22 = arith.mulf %19, %21 : vector<512x128xf32>
      %c0_11 = arith.constant 0 : index
      %c0_12 = arith.constant 0 : index
      %23 = vector.load %arg14[%c0_11, %c0_12] : memref<1x128xf32, #tpu.memory_space<vmem>>, vector<1x128xf32>
      %24 = vector.broadcast %23 : vector<1x128xf32> to vector<512x128xf32>
      %25 = arith.addf %22, %24 : vector<512x128xf32>
      %cst = arith.constant 0.000000e+00 : f32
      %26 = vector.broadcast %cst : f32 to vector<512x128xf32>
      %27 = arith.maximumf %25, %26 : vector<512x128xf32>
      %28 = arith.truncf %27 : vector<512x128xf32> to vector<512x128xbf16>
      %c0_13 = arith.constant 0 : index
      %c0_14 = arith.constant 0 : index
      %29 = vector.load %arg7[%c0_13, %c0_14] : memref<128x256xbf16, #tpu.memory_space<vmem>>, vector<128x256xbf16>
      %cst_15 = arith.constant dense<0.000000e+00> : vector<512x256xf32>
      %30 = tpu.matmul %28, %29, %cst_15 {dimension_numbers = #tpu.dot_dimension_numbers<[1], [0], [0], [1], [0, 0, 1, 1], [], []>} : vector<512x128xbf16>, vector<128x256xbf16>, vector<512x256xf32> -> vector<512x256xf32>
      %c0_16 = arith.constant 0 : index
      %c0_17 = arith.constant 0 : index
      %31 = vector.load %arg8[%c0_16, %c0_17] : memref<1x256xf32, #tpu.memory_space<vmem>>, vector<1x256xf32>
      %32 = vector.broadcast %31 : vector<1x256xf32> to vector<512x256xf32>
      %33 = arith.addf %30, %32 : vector<512x256xf32>
      %c0_18 = arith.constant 0 : index
      %c0_19 = arith.constant 0 : index
      %34 = vector.load %arg9[%c0_18, %c0_19] : memref<512x256xf32, #tpu.memory_space<vmem>>, vector<512x256xf32>
      tpu.vector_store %arg9[%c0_18, %c0_19], %33 {strides = array<i32>} : memref<512x256xf32, #tpu.memory_space<vmem>>, vector<512x256xf32>,
    } else {
    }
    return
  }
  func.func @transform_0(%arg0: i32, %arg1: i32) -> (i32, i32) {
    %c1_i32 = arith.constant 1 : i32
    %0 = arith.subi %c1_i32, %arg0 : i32
    %1 = arith.muli %0, %arg1 : i32
    %c1_i32_0 = arith.constant 1 : i32
    %2 = arith.muli %arg0, %c1_i32_0 : i32
    %3 = arith.addi %1, %2 : i32
    %c0_i32 = arith.constant 0 : i32
    %c0_i32_1 = arith.constant 0 : i32
    return %3, %c0_i32 : i32, i32
  }
  func.func @transform_1(%arg0: i32, %arg1: i32) -> (i32, i32) {
    %c0_i32 = arith.constant 0 : i32
    %c0_i32_0 = arith.constant 0 : i32
    %c0_i32_1 = arith.constant 0 : i32
    return %c0_i32, %c0_i32_0 : i32, i32
  }
  func.func @transform_2(%arg0: i32, %arg1: i32) -> (i32, i32) {
    %c0_i32 = arith.constant 0 : i32
    %c0_i32_0 = arith.constant 0 : i32
    %c0_i32_1 = arith.constant 0 : i32
    return %c0_i32, %c0_i32_0 : i32, i32
  }
  func.func @transform_3(%arg0: i32, %arg1: i32) -> (i32, i32) {
    %c0_i32 = arith.constant 0 : i32
    %c0_i32_0 = arith.constant 0 : i32
    %c0_i32_1 = arith.constant 0 : i32
    return %c0_i32, %c0_i32_0 : i32, i32
  }
  func.func @transform_4(%arg0: i32, %arg1: i32) -> (i32, i32) {
    %c0_i32 = arith.constant 0 : i32
    %c0_i32_0 = arith.constant 0 : i32
    %c0_i32_1 = arith.constant 0 : i32
    return %c0_i32, %c0_i32_0 : i32, i32
  }
  func.func @transform_5(%arg0: i32, %arg1: i32) -> (i32, i32) {
    %c0_i32 = arith.constant 0 : i32
    %c0_i32_0 = arith.constant 0 : i32
    %c0_i32_1 = arith.constant 0 : i32
    return %c0_i32, %c0_i32_0 : i32, i32
  }
  func.func @transform_6(%arg0: i32, %arg1: i32) -> (i32, i32) {
    %c0_i32 = arith.constant 0 : i32
    %c0_i32_0 = arith.constant 0 : i32
    %c0_i32_1 = arith.constant 0 : i32
    return %c0_i32, %c0_i32_0 : i32, i32
  }
  func.func @transform_7(%arg0: i32, %arg1: i32) -> (i32, i32) {
    %0 = arith.muli %arg0, %arg1 : i32
    %c0_i32 = arith.constant 0 : i32
    %c0_i32_0 = arith.constant 0 : i32
    return %0, %c0_i32 : i32, i32
  }
}

</mosaic_0001>

<llo_original>
// kernel: tpu_custom_call.1
$region0: #{tpu_custom_call.1}
  #allocation0 [shape = 'u32[]', space=smem, size = 0x4, offset = 0x4, fixed_abs, tag = 'smem constant byte address 0x4 - core index']
  #allocation1 [shape = 'u32[144,128]{1,0:T(1,128)}', space=vmem, size = 0x12000, scoped, tag = 'internal scratch']
  #allocation2 [shape = 'bf16[2,512,128]{2,1,0:T(16,128)(2,1)}', space=vmem, size = 0x40000, scoped, tag = 'scratch operand']
  #allocation3 [shape = 'f32[8,128]{1,0:T(8,128)}', space=vmem, size = 0x1000, scoped, tag = 'scratch operand']
  #allocation4 [shape = 'f32[8,128]{1,0:T(8,128)}', space=vmem, size = 0x1000, scoped, tag = 'scratch operand']
  #allocation5 [shape = 'f32[1,128]{1,0:T(1,128)}', space=vmem, size = 0x200, scoped, tag = 'scratch operand']
  #allocation6 [shape = 'f32[1,128]{1,0:T(1,128)}', space=vmem, size = 0x200, scoped, tag = 'scratch operand']
  %s0 = inlined_call_operand.hbm [shape: f32[1024,256], index: 0, kind: input, shape index: {}]
  %s1 = inlined_call_operand.hbm [shape: bf16[256,128], index: 1, kind: input, shape index: {}]
  %s2 = inlined_call_operand.vmem [shape: f32[1,128], index: 2, kind: input, shape index: {}]
  %s3 = inlined_call_operand.vmem [shape: f32[1,128], index: 3, kind: input, shape index: {}]
  %s4 = inlined_call_operand.vmem [shape: f32[1,128], index: 4, kind: input, shape index: {}]
  %s5 = inlined_call_operand.hbm [shape: bf16[128,256], index: 5, kind: input, shape index: {}]
  %s6 = inlined_call_operand.vmem [shape: f32[1,256], index: 6, kind: input, shape index: {}]
  %s7 = inlined_call_operand.hbm [shape: f32[1024,256], index: 7, kind: output, shape index: {}]
  %s8 = sld [smem:[#allocation0]]
  $region89: #{tpu_custom_call.1} parent=0
    _
  %s10 = ssub.s32 1, %s8
  %s11 = scalar_select 0, %s10, %s8
  $region1: #{tpu_custom_call.1} parent=0
    #allocation7 [shape = 'u8[1048576]{0}', space=vmem, size = 0x100000, scoped, tag = 'input window, operand 0']
    #allocation8 [shape = 's32[2]{0}', space=sflag, size = 0x8, scoped, tag = 'scoped memory for tpu_custom_call.1']
    #allocation9 [shape = 's32[2]{0}', space=sflag, size = 0x8, scoped, tag = 'scoped memory for tpu_custom_call.1']
    #allocation10 [shape = 'u8[65536]{0}', space=vmem, size = 0x10000, scoped, tag = 'input window, operand 1, single buffered']
    #allocation11 [shape = 's32[1]{0}', space=sflag, size = 0x4, scoped, tag = 'scoped memory for tpu_custom_call.1']
    #allocation12 [shape = 'u8[65536]{0}', space=vmem, size = 0x10000, scoped, tag = 'input window, operand 5, single buffered']
    #allocation13 [shape = 'u8[1048576]{0}', space=vmem, size = 0x100000, scoped, tag = 'output window, operand 0']
    %12 = vsyncpa [#allocation8], 0
    %s13 = scalar_lea.sflag [#allocation8], 1
    %14 = vsyncpa %s13, 0
    %15 = vsyncpa [#allocation11], 0
    %16 = vsyncpa [#allocation9], 0
    %s17 = scalar_lea.sflag [#allocation9], 1
    %18 = vsyncpa %s17, 0
    loop: start=0, step=1, limit=6
    $region2: #{tpu_custom_call.1} parent=1 // loop_pre_header
      _
    $region3: #{tpu_custom_call.1} parent=1 // loop_header
      %s20 = sphi 0, %s24
      %p21 = scmp.ge.s32.totalorder %s20, 6
      %s27 = sphi 0, %s39
      %s28 = sphi 0, %s35
      %s29 = sphi 0, %s27
      %s30 = sphi 0, %s28
      %s31 = sphi 0, %s29
      %s32 = sphi 0, %s30
      %s48 = sphi 0, %s50
      %s51 = sphi 0, %s48
      %s52 = sphi 0, %s51
      %s68 = sphi 0, %s52
      %s72 = sphi 0, %s72
      %s74 = sphi 0, %s72
      %s75 = sphi 0, %s74
      %s89 = sphi 0, %s75
      %s93 = sphi 0, %s93
      %s95 = sphi 0, %s93
      %s96 = sphi 0, %s95
      %s110 = sphi 0, %s96
      %s114 = sphi 0, %s114
      %s116 = sphi 0, %s114
      %s117 = sphi 0, %s116
      %s131 = sphi 0, %s117
      %s135 = sphi 0, %s135
      %s137 = sphi 0, %s135
      %s138 = sphi 0, %s137
      %s152 = sphi 0, %s138
      %s156 = sphi 0, %s156
      %s158 = sphi 0, %s156
      %s159 = sphi 0, %s158
      %s173 = sphi 0, %s159
      %s177 = sphi 0, %s177
      %s179 = sphi 0, %s177
      %s180 = sphi 0, %s179
      %s194 = sphi 0, %s180
      %s202 = sphi 0, %s204
      %s205 = sphi 0, %s202
      %s206 = sphi 0, %s205
      %s222 = sphi 0, %s206
    $region4: #{tpu_custom_call.1} parent=1 // loop_header_branch
      %23 = sbr.rel (%p21) target = $region8
    $region5: #{tpu_custom_call.1} parent=1 // loop_body
      %s25 = ssub.s32 %s20, 1
      %s26 = ssub.s32 %s20, 2
      %s33 = sadd.s32 1, %s28
      %p34 = scmp.ge.s32.totalorder %s33, 2
      %s35 = scalar_select %p34, 0, %s33
      %s36 = sadd.s32 1, %s27
      %s37 = scalar_select %p34, %s36, %s27
      %p38 = scmp.ge.s32.totalorder %s37, 2
      %s39 = scalar_select %p38, 0, %s37
      %s40 = ssub.s32 1, %s27
      %s41 = smul.u32 %s40, %s28
      %s42 = sadd.s32 %s41, %s27
      %s43 = ssub.s32 1, %s39
      %s44 = smul.u32 %s43, %s35
      %s45 = sadd.s32 %s44, %s39
      %s46 = ssub.s32 %s42, %s45
      %p47 = scmp.eq.s32.totalorder %s46, 0
      %s49 = sadd.s32 %s48, 1
      %s50 = scalar_select %p47, %s48, %s49
      %p53 = pneg %p47
      %p54 = scmp.eq.s32.totalorder %s20, 3
      %p55 = por %p53, %p54
      %p56 = scmp.ne.s32.totalorder %s48, %s51
      %p57 = scmp.eq.s32.totalorder %s20, 0
      %p58 = por %p56, %p57
      %p59 = scmp.ne.s32.totalorder %s48, %s51
      %p60 = scmp.eq.s32.totalorder %s25, 3
      %p61 = por %p59, %p60
      %p62 = scmp.ne.s32.totalorder %s51, %s52
      %p63 = scmp.eq.s32.totalorder %s25, 0
      %p64 = por %p62, %p63
      %p65 = scmp.ne.s32.totalorder %s51, %s52
      %p66 = scmp.eq.s32.totalorder %s26, 3
      %p67 = por %p65, %p66
      %p69 = scmp.ne.s32.totalorder %s52, %s68
      %p70 = scmp.eq.s32.totalorder %s26, 0
      %p71 = por %p69, %p70
      %s73 = sadd.s32 %s72, 1
      %p76 = scmp.eq.s32.totalorder %s20, 3
      %p77 = scmp.ne.s32.totalorder %s72, %s74
      %p78 = scmp.eq.s32.totalorder %s20, 0
      %p79 = por %p77, %p78
      %p80 = scmp.ne.s32.totalorder %s72, %s74
      %p81 = scmp.eq.s32.totalorder %s25, 3
      %p82 = por %p80, %p81
      %p83 = scmp.ne.s32.totalorder %s74, %s75
      %p84 = scmp.eq.s32.totalorder %s25, 0
      %p85 = por %p83, %p84
      %p86 = scmp.ne.s32.totalorder %s74, %s75
      %p87 = scmp.eq.s32.totalorder %s26, 3
      %p88 = por %p86, %p87
      %p90 = scmp.ne.s32.totalorder %s75, %s89
      %p91 = scmp.eq.s32.totalorder %s26, 0
      %p92 = por %p90, %p91
      %s94 = sadd.s32 %s93, 1
      %p97 = scmp.eq.s32.totalorder %s20, 3
      %p98 = scmp.ne.s32.totalorder %s93, %s95
      %p99 = scmp.eq.s32.totalorder %s20, 0
      %p100 = por %p98, %p99
      %p101 = scmp.ne.s32.totalorder %s93, %s95
      %p102 = scmp.eq.s32.totalorder %s25, 3
      %p103 = por %p101, %p102
      %p104 = scmp.ne.s32.totalorder %s95, %s96
      %p105 = scmp.eq.s32.totalorder %s25, 0
      %p106 = por %p104, %p105
      %p107 = scmp.ne.s32.totalorder %s95, %s96
      %p108 = scmp.eq.s32.totalorder %s26, 3
      %p109 = por %p107, %p108
      %p111 = scmp.ne.s32.totalorder %s96, %s110
      %p112 = scmp.eq.s32.totalorder %s26, 0
      %p113 = por %p111, %p112
      %s115 = sadd.s32 %s114, 1
      %p118 = scmp.eq.s32.totalorder %s20, 3
      %p119 = scmp.ne.s32.totalorder %s114, %s116
      %p120 = scmp.eq.s32.totalorder %s20, 0
      %p121 = por %p119, %p120
      %p122 = scmp.ne.s32.totalorder %s114, %s116
      %p123 = scmp.eq.s32.totalorder %s25, 3
      %p124 = por %p122, %p123
      %p125 = scmp.ne.s32.totalorder %s116, %s117
      %p126 = scmp.eq.s32.totalorder %s25, 0
      %p127 = por %p125, %p126
      %p128 = scmp.ne.s32.totalorder %s116, %s117
      %p129 = scmp.eq.s32.totalorder %s26, 3
      %p130 = por %p128, %p129
      %p132 = scmp.ne.s32.totalorder %s117, %s131
      %p133 = scmp.eq.s32.totalorder %s26, 0
      %p134 = por %p132, %p133
      %s136 = sadd.s32 %s135, 1
      %p139 = scmp.eq.s32.totalorder %s20, 3
      %p140 = scmp.ne.s32.totalorder %s135, %s137
      %p141 = scmp.eq.s32.totalorder %s20, 0
      %p142 = por %p140, %p141
      %p143 = scmp.ne.s32.totalorder %s135, %s137
      %p144 = scmp.eq.s32.totalorder %s25, 3
      %p145 = por %p143, %p144
      %p146 = scmp.ne.s32.totalorder %s137, %s138
      %p147 = scmp.eq.s32.totalorder %s25, 0
      %p148 = por %p146, %p147
      %p149 = scmp.ne.s32.totalorder %s137, %s138
      %p150 = scmp.eq.s32.totalorder %s26, 3
      %p151 = por %p149, %p150
      %p153 = scmp.ne.s32.totalorder %s138, %s152
      %p154 = scmp.eq.s32.totalorder %s26, 0
      %p155 = por %p153, %p154
      %s157 = sadd.s32 %s156, 1
      %p160 = scmp.eq.s32.totalorder %s20, 3
      %p161 = scmp.ne.s32.totalorder %s156, %s158
      %p162 = scmp.eq.s32.totalorder %s20, 0
      %p163 = por %p161, %p162
      %p164 = scmp.ne.s32.totalorder %s156, %s158
      %p165 = scmp.eq.s32.totalorder %s25, 3
      %p166 = por %p164, %p165
      %p167 = scmp.ne.s32.totalorder %s158, %s159
      %p168 = scmp.eq.s32.totalorder %s25, 0
      %p169 = por %p167, %p168
      %p170 = scmp.ne.s32.totalorder %s158, %s159
      %p171 = scmp.eq.s32.totalorder %s26, 3
      %p172 = por %p170, %p171
      %p174 = scmp.ne.s32.totalorder %s159, %s173
      %p175 = scmp.eq.s32.totalorder %s26, 0
      %p176 = por %p174, %p175
      %s178 = sadd.s32 %s177, 1
      %p181 = scmp.eq.s32.totalorder %s20, 3
      %p182 = scmp.ne.s32.totalorder %s177, %s179
      %p183 = scmp.eq.s32.totalorder %s20, 0
      %p184 = por %p182, %p183
      %p185 = scmp.ne.s32.totalorder %s177, %s179
      %p186 = scmp.eq.s32.totalorder %s25, 3
      %p187 = por %p185, %p186
      %p188 = scmp.ne.s32.totalorder %s179, %s180
      %p189 = scmp.eq.s32.totalorder %s25, 0
      %p190 = por %p188, %p189
      %p191 = scmp.ne.s32.totalorder %s179, %s180
      %p192 = scmp.eq.s32.totalorder %s26, 3
      %p193 = por %p191, %p192
      %p195 = scmp.ne.s32.totalorder %s180, %s194
      %p196 = scmp.eq.s32.totalorder %s26, 0
      %p197 = por %p195, %p196
      %s198 = smul.u32 %s27, %s28
      %s199 = smul.u32 %s39, %s35
      %s200 = ssub.s32 %s198, %s199
      %p201 = scmp.eq.s32.totalorder %s200, 0
      %s203 = sadd.s32 %s202, 1
      %s204 = scalar_select %p201, %s202, %s203
      %p207 = pneg %p201
      %p208 = scmp.eq.s32.totalorder %s20, 3
      %p209 = por %p207, %p208
      %p210 = scmp.ne.s32.totalorder %s202, %s205
      %p211 = scmp.eq.s32.totalorder %s20, 0
      %p212 = por %p210, %p211
      %p213 = scmp.ne.s32.totalorder %s202, %s205
      %p214 = scmp.eq.s32.totalorder %s25, 3
      %p215 = por %p213, %p214
      %p216 = scmp.ne.s32.totalorder %s205, %s206
      %p217 = scmp.eq.s32.totalorder %s25, 0
      %p218 = por %p216, %p217
      %p219 = scmp.ne.s32.totalorder %s205, %s206
      %p220 = scmp.eq.s32.totalorder %s26, 3
      %p221 = por %p219, %p220
      %p223 = scmp.ne.s32.totalorder %s206, %s222
      %p224 = scmp.eq.s32.totalorder %s26, 0
      %p225 = por %p223, %p224
      %p226 = scmp.le.s32.totalorder 1, %s20
      %p227 = scmp.lt.s32.totalorder %s20, 5
      %p228 = pnand %p226, %p227
      %p229 = pneg %p228
      // Predicated region
      $region9: #{tpu_custom_call.1} parent=5 // pred_check
        _
      $region10: #{tpu_custom_call.1} parent=5 // pred_check_branch
        %231 = sbr.rel (%p228) target = $region12
      $region11: #{tpu_custom_call.1} parent=5 // pred_region
        %s232 = ssub.s32 %s20, 1
        // Predicated region
        $region13: #{tpu_custom_call.1} parent=11 // pred_check
          %p233 = pneg %p85
        $region14: #{tpu_custom_call.1} parent=11 // pred_check_branch
          %235 = sbr.rel (%p233) target = $region16
        $region15: #{tpu_custom_call.1} parent=11 // pred_region
          %s237 = ssub.s32 2048, 2048
          %238 = vsyncadd [#allocation11], %s237
          %s239 = sshll.u32 [#allocation10], 4
          %s240 = int_to_ptr.vmem [resolvable:$true] %s239
          %245 = dma.hbm_to_vmem [thread:$0]  %s1, 2048, %s240, [#allocation11], 64, 64, 4
        $region16: #{tpu_custom_call.1} parent=11 // pred_fallthru
          _
        // Predicated region
        $region17: #{tpu_custom_call.1} parent=11 // pred_check
          %p246 = pneg %p106
        $region18: #{tpu_custom_call.1} parent=11 // pred_check_branch
          %248 = sbr.rel (%p246) target = $region20
        $region19: #{tpu_custom_call.1} parent=11 // pred_region
          _
        $region20: #{tpu_custom_call.1} parent=11 // pred_fallthru
          _
        // Predicated region
        $region21: #{tpu_custom_call.1} parent=11 // pred_check
          %p249 = pneg %p127
        $region22: #{tpu_custom_call.1} parent=11 // pred_check_branch
          %251 = sbr.rel (%p249) target = $region24
        $region23: #{tpu_custom_call.1} parent=11 // pred_region
          _
        $region24: #{tpu_custom_call.1} parent=11 // pred_fallthru
          _
        // Predicated region
        $region25: #{tpu_custom_call.1} parent=11 // pred_check
          %p252 = pneg %p148
        $region26: #{tpu_custom_call.1} parent=11 // pred_check_branch
          %254 = sbr.rel (%p252) target = $region28
        $region27: #{tpu_custom_call.1} parent=11 // pred_region
          _
        $region28: #{tpu_custom_call.1} parent=11 // pred_fallthru
          _
        // Predicated region
        $region29: #{tpu_custom_call.1} parent=11 // pred_check
          %p255 = pneg %p169
        $region30: #{tpu_custom_call.1} parent=11 // pred_check_branch
          %257 = sbr.rel (%p255) target = $region32
        $region31: #{tpu_custom_call.1} parent=11 // pred_region
          %s259 = ssub.s32 2048, 2048
          %260 = vsyncadd [#allocation11], %s259
          %s261 = sshll.u32 [#allocation12], 4
          %s262 = int_to_ptr.vmem [resolvable:$true] %s261
          %267 = dma.hbm_to_vmem [thread:$0]  %s5, 2048, %s262, [#allocation11], 128, 128, 8
        $region32: #{tpu_custom_call.1} parent=11 // pred_fallthru
          _
        // Predicated region
        $region33: #{tpu_custom_call.1} parent=11 // pred_check
          %p268 = pneg %p190
        $region34: #{tpu_custom_call.1} parent=11 // pred_check_branch
          %270 = sbr.rel (%p268) target = $region36
        $region35: #{tpu_custom_call.1} parent=11 // pred_region
          _
        $region36: #{tpu_custom_call.1} parent=11 // pred_fallthru
          _
      $region12: #{tpu_custom_call.1} parent=5 // pred_fallthru
        _
      %p271 = scmp.lt.s32.totalorder %s20, 4
      // Predicated region
      $region37: #{tpu_custom_call.1} parent=5 // pred_check
        %p272 = pneg %p271
      $region38: #{tpu_custom_call.1} parent=5 // pred_check_branch
        %274 = sbr.rel (%p272) target = $region40
      $region39: #{tpu_custom_call.1} parent=5 // pred_region
        // Predicated region
        $region41: #{tpu_custom_call.1} parent=39 // pred_check
          %p275 = pneg %p58
        $region42: #{tpu_custom_call.1} parent=39 // pred_check_branch
          %277 = sbr.rel (%p275) target = $region44
        $region43: #{tpu_custom_call.1} parent=39 // pred_region
          %s278 = sand.u32 %s48, 1
          %s279 = scalar_lea.sflag [#allocation8], %s278
          %s280 = sand.u32 %s48, 1
          %s281 = smul.addr %s280, 1024
          %s282 = scalar_lea.vmem [#allocation7], %s281
          %s283 = ssub.s32 1, %s27
          %s284 = smul.u32 %s283, %s28
          %s285 = sadd.s32 %s284, %s27
          %s286 = smul.u32 64, %s285
          %s288 = ssub.s32 16384, 16384
          %289 = vsyncadd %s279, %s288
          %s290 = smul.addr %s286, 2
          %s291 = smul.addr %s290, 128
          %s292 = scalar_lea.hbm %s0, %s291
          %s293 = sshll.u32 %s282, 4
          %s294 = int_to_ptr.vmem [resolvable:$true] %s293
          %299 = dma.hbm_to_vmem [thread:$0]  %s292, 16384, %s294, %s279, 256, 256, 16
        $region44: #{tpu_custom_call.1} parent=39 // pred_fallthru
          _
      $region40: #{tpu_custom_call.1} parent=5 // pred_fallthru
        _
      %p300 = scmp.le.s32.totalorder 1, %s20
      %p301 = scmp.lt.s32.totalorder %s20, 5
      %p302 = pnand %p300, %p301
      %p303 = pneg %p302
      // Predicated region
      $region45: #{tpu_custom_call.1} parent=5 // pred_check
        _
      $region46: #{tpu_custom_call.1} parent=5 // pred_check_branch
        %305 = sbr.rel (%p302) target = $region48
      $region47: #{tpu_custom_call.1} parent=5 // pred_region
        %s306 = ssub.s32 %s20, 1
        %s307 = sand.u32 %s51, 1
        %s308 = scalar_lea.sflag [#allocation8], %s307
        %s309 = sand.u32 %s51, 1
        %s310 = smul.addr %s309, 1024
        %s311 = scalar_lea.vmem [#allocation7], %s310
        // Predicated region
        $region49: #{tpu_custom_call.1} parent=47 // pred_check
          %p312 = pneg %p64
        $region50: #{tpu_custom_call.1} parent=47 // pred_check_branch
          %314 = sbr.rel (%p312) target = $region52
        $region51: #{tpu_custom_call.1} parent=47 // pred_region
          %315 = dma.done %s308, 16384
        $region52: #{tpu_custom_call.1} parent=47 // pred_fallthru
          _
        // Predicated region
        $region53: #{tpu_custom_call.1} parent=47 // pred_check
          %p316 = pneg %p85
        $region54: #{tpu_custom_call.1} parent=47 // pred_check_branch
          %318 = sbr.rel (%p316) target = $region56
        $region55: #{tpu_custom_call.1} parent=47 // pred_region
          %319 = dma.done [#allocation11], 2048
        $region56: #{tpu_custom_call.1} parent=47 // pred_fallthru
          _
        // Predicated region
        $region57: #{tpu_custom_call.1} parent=47 // pred_check
          %p320 = pneg %p169
        $region58: #{tpu_custom_call.1} parent=47 // pred_check_branch
          %322 = sbr.rel (%p320) target = $region60
        $region59: #{tpu_custom_call.1} parent=47 // pred_region
          %323 = dma.done [#allocation11], 2048
        $region60: #{tpu_custom_call.1} parent=47 // pred_fallthru
          _
        %s324 = sand.u32 %s51, 1
        %s325 = scalar_lea.sflag [#allocation8], %s324
        %s326 = sand.u32 %s51, 1
        %s327 = smul.addr %s326, 1024
        %s328 = scalar_lea.vmem [#allocation7], %s327
        %p329 = pneg %p64
        %p330 = pneg %p61
        %p331 = pneg %p85
        %p332 = pneg %p82
        %p333 = pneg %p106
        %p334 = pneg %p103
        %p335 = pneg %p127
        %p336 = pneg %p124
        %p337 = pneg %p148
        %p338 = pneg %p145
        %p339 = pneg %p169
        %p340 = pneg %p166
        %p341 = pneg %p190
        %p342 = pneg %p187
        %p343 = pneg %p218
        %p344 = pneg %p215
        %s345 = sand.u32 %s205, 1
        %s346 = scalar_lea.sflag [#allocation9], %s345
        %s347 = sand.u32 %s205, 1
        %s348 = smul.addr %s347, 1024
        %s349 = scalar_lea.vmem [#allocation13], %s348
        %s350 = ssub.s32 1, %s29
        %s351 = smul.u32 %s350, %s30
        %s352 = sadd.s32 %s351, %s29
        %s353 = smul.u32 64, %s352
        %s354 = smul.u32 %s29, %s30
        %s355 = smul.u32 64, %s354
        %p357 = scmp.eq.s32.totalorder %s29, 0
        %p358 = scmp.eq.s32.totalorder %s30, 0
        %p359 = pnand %p357, %p358
        %p360 = pneg %p359
        // Predicated region
        $region61: #{tpu_custom_call.1} parent=47 // pred_check
          _
        $region62: #{tpu_custom_call.1} parent=47 // pred_check_branch
          %362 = sbr.rel (%p359) target = $region64
        $region63: #{tpu_custom_call.1} parent=47 // pred_region
          %363 = vst [vmem:[#allocation3] sm:$0xff] 0.0
          %364 = vst [vmem:[#allocation4] sm:$0xff] 0.0
        $region64: #{tpu_custom_call.1} parent=47 // pred_fallthru
          _
        // Predicated region
        $region65: #{tpu_custom_call.1} parent=47 // pred_check
          %p365 = pneg %p357
        $region66: #{tpu_custom_call.1} parent=47 // pred_check_branch
          %367 = sbr.rel (%p365) target = $region68
        $region67: #{tpu_custom_call.1} parent=47 // pred_region
          %v368 = vld [vmem:[%s311] sm:$0xff]
          %v369 = vld [vmem:[%s311 + $0x8] sm:$0xff]
          %v370 = vld [vmem:[%s311 + $0x10] sm:$0xff]
          %v371 = vld [vmem:[%s311 + $0x18] sm:$0xff]
          %v372 = vld [vmem:[%s311 + $0x20] sm:$0xff]
          %v373 = vld [vmem:[%s311 + $0x28] sm:$0xff]
          %v374 = vld [vmem:[%s311 + $0x30] sm:$0xff]
          %v375 = vld [vmem:[%s311 + $0x38] sm:$0xff]
          %v376 = vld [vmem:[%s311 + $0x40] sm:$0xff]
          %v377 = vld [vmem:[%s311 + $0x48] sm:$0xff]
          %v378 = vld [vmem:[%s311 + $0x50] sm:$0xff]
          %v379 = vld [vmem:[%s311 + $0x58] sm:$0xff]
          %v380 = vld [vmem:[%s311 + $0x60] sm:$0xff]
          %v381 = vld [vmem:[%s311 + $0x68] sm:$0xff]
          %v382 = vld [vmem:[%s311 + $0x70] sm:$0xff]
          %v383 = vld [vmem:[%s311 + $0x78] sm:$0xff]
          %v384 = vld [vmem:[%s311 + $0x80] sm:$0xff]
          %v385 = vld [vmem:[%s311 + $0x88] sm:$0xff]
          %v386 = vld [vmem:[%s311 + $0x90] sm:$0xff]
          %v387 = vld [vmem:[%s311 + $0x98] sm:$0xff]
          %v388 = vld [vmem:[%s311 + $0xa0] sm:$0xff]
          %v389 = vld [vmem:[%s311 + $0xa8] sm:$0xff]
          %v390 = vld [vmem:[%s311 + $0xb0] sm:$0xff]
          %v391 = vld [vmem:[%s311 + $0xb8] sm:$0xff]
          %v392 = vld [vmem:[%s311 + $0xc0] sm:$0xff]
          %v393 = vld [vmem:[%s311 + $0xc8] sm:$0xff]
          %v394 = vld [vmem:[%s311 + $0xd0] sm:$0xff]
          %v395 = vld [vmem:[%s311 + $0xd8] sm:$0xff]
          %v396 = vld [vmem:[%s311 + $0xe0] sm:$0xff]
          %v397 = vld [vmem:[%s311 + $0xe8] sm:$0xff]
          %v398 = vld [vmem:[%s311 + $0xf0] sm:$0xff]
          %v399 = vld [vmem:[%s311 + $0xf8] sm:$0xff]
          %v400 = vld [vmem:[%s311 + $0x100] sm:$0xff]
          %v401 = vld [vmem:[%s311 + $0x108] sm:$0xff]
          %v402 = vld [vmem:[%s311 + $0x110] sm:$0xff]
          %v403 = vld [vmem:[%s311 + $0x118] sm:$0xff]
          %v404 = vld [vmem:[%s311 + $0x120] sm:$0xff]
          %v405 = vld [vmem:[%s311 + $0x128] sm:$0xff]
          %v406 = vld [vmem:[%s311 + $0x130] sm:$0xff]
          %v407 = vld [vmem:[%s311 + $0x138] sm:$0xff]
          %v408 = vld [vmem:[%s311 + $0x140] sm:$0xff]
          %v409 = vld [vmem:[%s311 + $0x148] sm:$0xff]
          %v410 = vld [vmem:[%s311 + $0x150] sm:$0xff]
          %v411 = vld [vmem:[%s311 + $0x158] sm:$0xff]
          %v412 = vld [vmem:[%s311 + $0x160] sm:$0xff]
          %v413 = vld [vmem:[%s311 + $0x168] sm:$0xff]
          %v414 = vld [vmem:[%s311 + $0x170] sm:$0xff]
          %v415 = vld [vmem:[%s311 + $0x178] sm:$0xff]
          %v416 = vld [vmem:[%s311 + $0x180] sm:$0xff]
          %v417 = vld [vmem:[%s311 + $0x188] sm:$0xff]
          %v418 = vld [vmem:[%s311 + $0x190] sm:$0xff]
          %v419 = vld [vmem:[%s311 + $0x198] sm:$0xff]
          %v420 = vld [vmem:[%s311 + $0x1a0] sm:$0xff]
          %v421 = vld [vmem:[%s311 + $0x1a8] sm:$0xff]
          %v422 = vld [vmem:[%s311 + $0x1b0] sm:$0xff]
          %v423 = vld [vmem:[%s311 + $0x1b8] sm:$0xff]
          %v424 = vld [vmem:[%s311 + $0x1c0] sm:$0xff]
          %v425 = vld [vmem:[%s311 + $0x1c8] sm:$0xff]
          %v426 = vld [vmem:[%s311 + $0x1d0] sm:$0xff]
          %v427 = vld [vmem:[%s311 + $0x1d8] sm:$0xff]
          %v428 = vld [vmem:[%s311 + $0x1e0] sm:$0xff]
          %v429 = vld [vmem:[%s311 + $0x1e8] sm:$0xff]
          %v430 = vld [vmem:[%s311 + $0x1f0] sm:$0xff]
          %v431 = vld [vmem:[%s311 + $0x1f8] sm:$0xff]
          %v432 = vld [vmem:[%s311 + $0x200] sm:$0xff]
          %v433 = vld [vmem:[%s311 + $0x208] sm:$0xff]
          %v434 = vld [vmem:[%s311 + $0x210] sm:$0xff]
          %v435 = vld [vmem:[%s311 + $0x218] sm:$0xff]
          %v436 = vld [vmem:[%s311 + $0x220] sm:$0xff]
          %v437 = vld [vmem:[%s311 + $0x228] sm:$0xff]
          %v438 = vld [vmem:[%s311 + $0x230] sm:$0xff]
          %v439 = vld [vmem:[%s311 + $0x238] sm:$0xff]
          %v440 = vld [vmem:[%s311 + $0x240] sm:$0xff]
          %v441 = vld [vmem:[%s311 + $0x248] sm:$0xff]
          %v442 = vld [vmem:[%s311 + $0x250] sm:$0xff]
          %v443 = vld [vmem:[%s311 + $0x258] sm:$0xff]
          %v444 = vld [vmem:[%s311 + $0x260] sm:$0xff]
          %v445 = vld [vmem:[%s311 + $0x268] sm:$0xff]
          %v446 = vld [vmem:[%s311 + $0x270] sm:$0xff]
          %v447 = vld [vmem:[%s311 + $0x278] sm:$0xff]
          %v448 = vld [vmem:[%s311 + $0x280] sm:$0xff]
          %v449 = vld [vmem:[%s311 + $0x288] sm:$0xff]
          %v450 = vld [vmem:[%s311 + $0x290] sm:$0xff]
          %v451 = vld [vmem:[%s311 + $0x298] sm:$0xff]
          %v452 = vld [vmem:[%s311 + $0x2a0] sm:$0xff]
          %v453 = vld [vmem:[%s311 + $0x2a8] sm:$0xff]
          %v454 = vld [vmem:[%s311 + $0x2b0] sm:$0xff]
          %v455 = vld [vmem:[%s311 + $0x2b8] sm:$0xff]
          %v456 = vld [vmem:[%s311 + $0x2c0] sm:$0xff]
          %v457 = vld [vmem:[%s311 + $0x2c8] sm:$0xff]
          %v458 = vld [vmem:[%s311 + $0x2d0] sm:$0xff]
          %v459 = vld [vmem:[%s311 + $0x2d8] sm:$0xff]
          %v460 = vld [vmem:[%s311 + $0x2e0] sm:$0xff]
          %v461 = vld [vmem:[%s311 + $0x2e8] sm:$0xff]
          %v462 = vld [vmem:[%s311 + $0x2f0] sm:$0xff]
          %v463 = vld [vmem:[%s311 + $0x2f8] sm:$0xff]
          %v464 = vld [vmem:[%s311 + $0x300] sm:$0xff]
          %v465 = vld [vmem:[%s311 + $0x308] sm:$0xff]
          %v466 = vld [vmem:[%s311 + $0x310] sm:$0xff]
          %v467 = vld [vmem:[%s311 + $0x318] sm:$0xff]
          %v468 = vld [vmem:[%s311 + $0x320] sm:$0xff]
          %v469 = vld [vmem:[%s311 + $0x328] sm:$0xff]
          %v470 = vld [vmem:[%s311 + $0x330] sm:$0xff]
          %v471 = vld [vmem:[%s311 + $0x338] sm:$0xff]
          %v472 = vld [vmem:[%s311 + $0x340] sm:$0xff]
          %v473 = vld [vmem:[%s311 + $0x348] sm:$0xff]
          %v474 = vld [vmem:[%s311 + $0x350] sm:$0xff]
          %v475 = vld [vmem:[%s311 + $0x358] sm:$0xff]
          %v476 = vld [vmem:[%s311 + $0x360] sm:$0xff]
          %v477 = vld [vmem:[%s311 + $0x368] sm:$0xff]
          %v478 = vld [vmem:[%s311 + $0x370] sm:$0xff]
          %v479 = vld [vmem:[%s311 + $0x378] sm:$0xff]
          %v480 = vld [vmem:[%s311 + $0x380] sm:$0xff]
          %v481 = vld [vmem:[%s311 + $0x388] sm:$0xff]
          %v482 = vld [vmem:[%s311 + $0x390] sm:$0xff]
          %v483 = vld [vmem:[%s311 + $0x398] sm:$0xff]
          %v484 = vld [vmem:[%s311 + $0x3a0] sm:$0xff]
          %v485 = vld [vmem:[%s311 + $0x3a8] sm:$0xff]
          %v486 = vld [vmem:[%s311 + $0x3b0] sm:$0xff]
          %v487 = vld [vmem:[%s311 + $0x3b8] sm:$0xff]
          %v488 = vld [vmem:[%s311 + $0x3c0] sm:$0xff]
          %v489 = vld [vmem:[%s311 + $0x3c8] sm:$0xff]
          %v490 = vld [vmem:[%s311 + $0x3d0] sm:$0xff]
          %v491 = vld [vmem:[%s311 + $0x3d8] sm:$0xff]
          %v492 = vld [vmem:[%s311 + $0x3e0] sm:$0xff]
          %v493 = vld [vmem:[%s311 + $0x3e8] sm:$0xff]
          %v494 = vld [vmem:[%s311 + $0x3f0] sm:$0xff]
          %v495 = vld [vmem:[%s311 + $0x3f8] sm:$0xff]
          %v496 = vpack.c.bf16 %v370, %v368
          %v497 = vpack.c.bf16 %v371, %v369
          %v498 = vpack.c.bf16 %v374, %v372
          %v499 = vpack.c.bf16 %v375, %v373
          %v500 = vpack.c.bf16 %v378, %v376
          %v501 = vpack.c.bf16 %v379, %v377
          %v502 = vpack.c.bf16 %v382, %v380
          %v503 = vpack.c.bf16 %v383, %v381
          %v504 = vpack.c.bf16 %v386, %v384
          %v505 = vpack.c.bf16 %v387, %v385
          %v506 = vpack.c.bf16 %v390, %v388
          %v507 = vpack.c.bf16 %v391, %v389
          %v508 = vpack.c.bf16 %v394, %v392
          %v509 = vpack.c.bf16 %v395, %v393
          %v510 = vpack.c.bf16 %v398, %v396
          %v511 = vpack.c.bf16 %v399, %v397
          %v512 = vpack.c.bf16 %v402, %v400
          %v513 = vpack.c.bf16 %v403, %v401
          %v514 = vpack.c.bf16 %v406, %v404
          %v515 = vpack.c.bf16 %v407, %v405
          %v516 = vpack.c.bf16 %v410, %v408
          %v517 = vpack.c.bf16 %v411, %v409
          %v518 = vpack.c.bf16 %v414, %v412
          %v519 = vpack.c.bf16 %v415, %v413
          %v520 = vpack.c.bf16 %v418, %v416
          %v521 = vpack.c.bf16 %v419, %v417
          %v522 = vpack.c.bf16 %v422, %v420
          %v523 = vpack.c.bf16 %v423, %v421
          %v524 = vpack.c.bf16 %v426, %v424
          %v525 = vpack.c.bf16 %v427, %v425
          %v526 = vpack.c.bf16 %v430, %v428
          %v527 = vpack.c.bf16 %v431, %v429
          %v528 = vpack.c.bf16 %v434, %v432
          %v529 = vpack.c.bf16 %v435, %v433
          %v530 = vpack.c.bf16 %v438, %v436
          %v531 = vpack.c.bf16 %v439, %v437
          %v532 = vpack.c.bf16 %v442, %v440
          %v533 = vpack.c.bf16 %v443, %v441
          %v534 = vpack.c.bf16 %v446, %v444
          %v535 = vpack.c.bf16 %v447, %v445
          %v536 = vpack.c.bf16 %v450, %v448
          %v537 = vpack.c.bf16 %v451, %v449
          %v538 = vpack.c.bf16 %v454, %v452
          %v539 = vpack.c.bf16 %v455, %v453
          %v540 = vpack.c.bf16 %v458, %v456
          %v541 = vpack.c.bf16 %v459, %v457
          %v542 = vpack.c.bf16 %v462, %v460
          %v543 = vpack.c.bf16 %v463, %v461
          %v544 = vpack.c.bf16 %v466, %v464
          %v545 = vpack.c.bf16 %v467, %v465
          %v546 = vpack.c.bf16 %v470, %v468
          %v547 = vpack.c.bf16 %v471, %v469
          %v548 = vpack.c.bf16 %v474, %v472
          %v549 = vpack.c.bf16 %v475, %v473
          %v550 = vpack.c.bf16 %v478, %v476
          %v551 = vpack.c.bf16 %v479, %v477
          %v552 = vpack.c.bf16 %v482, %v480
          %v553 = vpack.c.bf16 %v483, %v481
          %v554 = vpack.c.bf16 %v486, %v484
          %v555 = vpack.c.bf16 %v487, %v485
          %v556 = vpack.c.bf16 %v490, %v488
          %v557 = vpack.c.bf16 %v491, %v489
          %v558 = vpack.c.bf16 %v494, %v492
          %v559 = vpack.c.bf16 %v495, %v493
          %v560 = vld [vmem:[#allocation10] sm:$0xf]
          %v561 = vld [vmem:[#allocation10 + $0x4] sm:$0xf]
          %v562 = vld [vmem:[#allocation10 + $0x8] sm:$0xf]
          %v563 = vld [vmem:[#allocation10 + $0xc] sm:$0xf]
          %v564 = vld [vmem:[#allocation10 + $0x10] sm:$0xf]
          %v565 = vld [vmem:[#allocation10 + $0x14] sm:$0xf]
          %v566 = vld [vmem:[#allocation10 + $0x18] sm:$0xf]
          %v567 = vld [vmem:[#allocation10 + $0x1c] sm:$0xf]
          %v568 = vld [vmem:[#allocation10 + $0x20] sm:$0xf]
          %v569 = vld [vmem:[#allocation10 + $0x24] sm:$0xf]
          %v570 = vld [vmem:[#allocation10 + $0x28] sm:$0xf]
          %v571 = vld [vmem:[#allocation10 + $0x2c] sm:$0xf]
          %v572 = vld [vmem:[#allocation10 + $0x30] sm:$0xf]
          %v573 = vld [vmem:[#allocation10 + $0x34] sm:$0xf]
          %v574 = vld [vmem:[#allocation10 + $0x38] sm:$0xf]
          %v575 = vld [vmem:[#allocation10 + $0x3c] sm:$0xf]
          %v576 = vld [vmem:[#allocation10 + $0x40] sm:$0xf]
          %v577 = vld [vmem:[#allocation10 + $0x44] sm:$0xf]
          %v578 = vld [vmem:[#allocation10 + $0x48] sm:$0xf]
          %v579 = vld [vmem:[#allocation10 + $0x4c] sm:$0xf]
          %v580 = vld [vmem:[#allocation10 + $0x50] sm:$0xf]
          %v581 = vld [vmem:[#allocation10 + $0x54] sm:$0xf]
          %v582 = vld [vmem:[#allocation10 + $0x58] sm:$0xf]
          %v583 = vld [vmem:[#allocation10 + $0x5c] sm:$0xf]
          %v584 = vld [vmem:[#allocation10 + $0x60] sm:$0xf]
          %v585 = vld [vmem:[#allocation10 + $0x64] sm:$0xf]
          %v586 = vld [vmem:[#allocation10 + $0x68] sm:$0xf]
          %v587 = vld [vmem:[#allocation10 + $0x6c] sm:$0xf]
          %v588 = vld [vmem:[#allocation10 + $0x70] sm:$0xf]
          %v589 = vld [vmem:[#allocation10 + $0x74] sm:$0xf]
          %v590 = vld [vmem:[#allocation10 + $0x78] sm:$0xf]
          %v591 = vld [vmem:[#allocation10 + $0x7c] sm:$0xf]
          %v624 = vunpack.c.l.b16 %v560
          %v625 = vunpack.c.l.b16 %v561
          %v626 = vunpack.c.l.b16 %v562
          %v627 = vunpack.c.l.b16 %v563
          %v628 = vunpack.c.l.b16 %v564
          %v629 = vunpack.c.l.b16 %v565
          %v630 = vunpack.c.l.b16 %v566
          %v631 = vunpack.c.l.b16 %v567
          %v632 = vunpack.c.l.b16 %v568
          %v633 = vunpack.c.l.b16 %v569
          %v634 = vunpack.c.l.b16 %v570
          %v635 = vunpack.c.l.b16 %v571
          %v636 = vunpack.c.l.b16 %v572
          %v637 = vunpack.c.l.b16 %v573
          %v638 = vunpack.c.l.b16 %v574
          %v639 = vunpack.c.l.b16 %v575
          %v640 = vunpack.c.l.b16 %v576
          %v641 = vunpack.c.l.b16 %v577
          %v642 = vunpack.c.l.b16 %v578
          %v643 = vunpack.c.l.b16 %v579
          %v644 = vunpack.c.l.b16 %v580
          %v645 = vunpack.c.l.b16 %v581
          %v646 = vunpack.c.l.b16 %v582
          %v647 = vunpack.c.l.b16 %v583
          %v648 = vunpack.c.l.b16 %v584
          %v649 = vunpack.c.l.b16 %v585
          %v650 = vunpack.c.l.b16 %v586
          %v651 = vunpack.c.l.b16 %v587
          %v652 = vunpack.c.l.b16 %v588
          %v653 = vunpack.c.l.b16 %v589
          %v654 = vunpack.c.l.b16 %v590
          %v655 = vunpack.c.l.b16 %v591
          %v656 = vpack.c.b16 %v625, %v624
          %v657 = vpack.c.b16 %v627, %v626
          %v658 = vpack.c.b16 %v629, %v628
          %v659 = vpack.c.b16 %v631, %v630
          %v660 = vpack.c.b16 %v633, %v632
          %v661 = vpack.c.b16 %v635, %v634
          %v662 = vpack.c.b16 %v637, %v636
          %v663 = vpack.c.b16 %v639, %v638
          %v664 = vpack.c.b16 %v641, %v640
          %v665 = vpack.c.b16 %v643, %v642
          %v666 = vpack.c.b16 %v645, %v644
          %v667 = vpack.c.b16 %v647, %v646
          %v668 = vpack.c.b16 %v649, %v648
          %v669 = vpack.c.b16 %v651, %v650
          %v670 = vpack.c.b16 %v653, %v652
          %v671 = vpack.c.b16 %v655, %v654
          %688 = vmatprep.subr.bf16.mxu0 0
          %689 = vmatpush1.bf16.msra.mxu0 %v656
          %690 = vmatprep.subr.bf16.mxu0 0
          %691 = vmatpush1.bf16.msra.mxu0 %v657
          %692 = vmatprep.subr.bf16.mxu0 0
          %693 = vmatpush1.bf16.msra.mxu0 %v658
          %694 = vmatprep.subr.bf16.mxu0 0
          %695 = vmatpush1.bf16.msra.mxu0 %v659
          %696 = vmatprep.subr.bf16.mxu0 0
          %697 = vmatpush1.bf16.msra.mxu0 %v660
          %698 = vmatprep.subr.bf16.mxu0 0
          %699 = vmatpush1.bf16.msra.mxu0 %v661
          %700 = vmatprep.subr.bf16.mxu0 0
          %701 = vmatpush1.bf16.msra.mxu0 %v662
          %702 = vmatprep.subr.bf16.mxu0 0
          %703 = vmatpush1.bf16.msra.mxu0 %v663
          %704 = vmatprep.subr.bf16.mxu0 0
          %705 = vmatpush1.bf16.msra.mxu0 %v664
          %706 = vmatprep.subr.bf16.mxu0 0
          %707 = vmatpush1.bf16.msra.mxu0 %v665
          %708 = vmatprep.subr.bf16.mxu0 0
          %709 = vmatpush1.bf16.msra.mxu0 %v666
          %710 = vmatprep.subr.bf16.mxu0 0
          %711 = vmatpush1.bf16.msra.mxu0 %v667
          %712 = vmatprep.subr.bf16.mxu0 0
          %713 = vmatpush1.bf16.msra.mxu0 %v668
          %714 = vmatprep.subr.bf16.mxu0 0
          %715 = vmatpush1.bf16.msra.mxu0 %v669
          %716 = vmatprep.subr.bf16.mxu0 0
          %717 = vmatpush1.bf16.msra.mxu0 %v670
          %718 = vmatprep.subr.bf16.mxu0 0
          %719 = vmatpush1.bf16.msra.mxu0 %v671
          %720 = vmatprep.mubr.bf16.mxu0 %v497
          %721 = vmatmul.mubr.bf16.gmra.mrb[0].mxu0 %v496
          %v722 = vpop.f32.mrb[0].mxu0
          %v723 = vadd.f32 0.0, %v722
          %v724 = vpop.f32.mrb[0].mxu0
          %v725 = vpop.f32.mrb[0].mxu0
          %v726 = vadd.f32 0.0, %v725
          %v727 = vpop.f32.mrb[0].mxu0
          %728 = vmatprep.mubr.bf16.mxu0 %v499
          %729 = vmatmul.mubr.bf16.gmra.mrb[0].mxu0 %v498
          %v730 = vpop.f32.mrb[0].mxu0
          %v731 = vadd.f32 0.0, %v730
          %v732 = vpop.f32.mrb[0].mxu0
          %v733 = vpop.f32.mrb[0].mxu0
          %v734 = vadd.f32 0.0, %v733
          %v735 = vpop.f32.mrb[0].mxu0
          %736 = vmatprep.mubr.bf16.mxu0 %v501
          %737 = vmatmul.mubr.bf16.gmra.mrb[0].mxu0 %v500
          %v738 = vpop.f32.mrb[0].mxu0
          %v739 = vadd.f32 0.0, %v738
          %v740 = vpop.f32.mrb[0].mxu0
          %v741 = vpop.f32.mrb[0].mxu0
          %v742 = vadd.f32 0.0, %v741
          %v743 = vpop.f32.mrb[0].mxu0
          %744 = vmatprep.mubr.bf16.mxu0 %v503
          %745 = vmatmul.mubr.bf16.gmra.mrb[0].mxu0 %v502
          %v746 = vpop.f32.mrb[0].mxu0
          %v747 = vadd.f32 0.0, %v746
          %v748 = vpop.f32.mrb[0].mxu0
          %v749 = vpop.f32.mrb[0].mxu0
          %v750 = vadd.f32 0.0, %v749
          %v751 = vpop.f32.mrb[0].mxu0
          %752 = vmatprep.mubr.bf16.mxu0 %v505
          %753 = vmatmul.mubr.bf16.gmra.mrb[0].mxu0 %v504
          %v754 = vpop.f32.mrb[0].mxu0
          %v755 = vadd.f32 0.0, %v754
          %v756 = vpop.f32.mrb[0].mxu0
          %v757 = vpop.f32.mrb[0].mxu0
          %v758 = vadd.f32 0.0, %v757
          %v759 = vpop.f32.mrb[0].mxu0
          %760 = vmatprep.mubr.bf16.mxu0 %v507
          %761 = vmatmul.mubr.bf16.gmra.mrb[0].mxu0 %v506
          %v762 = vpop.f32.mrb[0].mxu0
          %v763 = vadd.f32 0.0, %v762
          %v764 = vpop.f32.mrb[0].mxu0
          %v765 = vpop.f32.mrb[0].mxu0
          %v766 = vadd.f32 0.0, %v765
          %v767 = vpop.f32.mrb[0].mxu0
          %768 = vmatprep.mubr.bf16.mxu0 %v509
          %769 = vmatmul.mubr.bf16.gmra.mrb[0].mxu0 %v508
          %v770 = vpop.f32.mrb[0].mxu0
          %v771 = vadd.f32 0.0, %v770
          %v772 = vpop.f32.mrb[0].mxu0
          %v773 = vpop.f32.mrb[0].mxu0
          %v774 = vadd.f32 0.0, %v773
          %v775 = vpop.f32.mrb[0].mxu0
          %776 = vmatprep.mubr.bf16.mxu0 %v511
          %777 = vmatmul.mubr.bf16.gmra.mrb[0].mxu0 %v510
          %v778 = vpop.f32.mrb[0].mxu0
          %v779 = vadd.f32 0.0, %v778
          %v780 = vpop.f32.mrb[0].mxu0
          %v781 = vpop.f32.mrb[0].mxu0
          %v782 = vadd.f32 0.0, %v781
          %v783 = vpop.f32.mrb[0].mxu0
          %784 = vmatprep.mubr.bf16.mxu0 %v513
          %785 = vmatmul.mubr.bf16.gmra.mrb[0].mxu0 %v512
          %v786 = vpop.f32.mrb[0].mxu0
          %v787 = vadd.f32 0.0, %v786
          %v788 = vpop.f32.mrb[0].mxu0
          %v789 = vpop.f32.mrb[0].mxu0
          %v790 = vadd.f32 0.0, %v789
          %v791 = vpop.f32.mrb[0].mxu0
          %792 = vmatprep.mubr.bf16.mxu0 %v515
          %793 = vmatmul.mubr.bf16.gmra.mrb[0].mxu0 %v514
          %v794 = vpop.f32.mrb[0].mxu0
          %v795 = vadd.f32 0.0, %v794
          %v796 = vpop.f32.mrb[0].mxu0
          %v797 = vpop.f32.mrb[0].mxu0
          %v798 = vadd.f32 0.0, %v797
          %v799 = vpop.f32.mrb[0].mxu0
          %800 = vmatprep.mubr.bf16.mxu0 %v517
          %801 = vmatmul.mubr.bf16.gmra.mrb[0].mxu0 %v516
          %v802 = vpop.f32.mrb[0].mxu0
          %v803 = vadd.f32 0.0, %v802
          %v804 = vpop.f32.mrb[0].mxu0
          %v805 = vpop.f32.mrb[0].mxu0
          %v806 = vadd.f32 0.0, %v805
          %v807 = vpop.f32.mrb[0].mxu0
          %808 = vmatprep.mubr.bf16.mxu0 %v519
          %809 = vmatmul.mubr.bf16.gmra.mrb[0].mxu0 %v518
          %v810 = vpop.f32.mrb[0].mxu0
          %v811 = vadd.f32 0.0, %v810
          %v812 = vpop.f32.mrb[0].mxu0
          %v813 = vpop.f32.mrb[0].mxu0
          %v814 = vadd.f32 0.0, %v813
          %v815 = vpop.f32.mrb[0].mxu0
          %816 = vmatprep.mubr.bf16.mxu0 %v521
          %817 = vmatmul.mubr.bf16.gmra.mrb[0].mxu0 %v520
          %v818 = vpop.f32.mrb[0].mxu0
          %v819 = vadd.f32 0.0, %v818
          %v820 = vpop.f32.mrb[0].mxu0
          %v821 = vpop.f32.mrb[0].mxu0
          %v822 = vadd.f32 0.0, %v821
          %v823 = vpop.f32.mrb[0].mxu0
          %824 = vmatprep.mubr.bf16.mxu0 %v523
          %825 = vmatmul.mubr.bf16.gmra.mrb[0].mxu0 %v522
          %v826 = vpop.f32.mrb[0].mxu0
          %v827 = vadd.f32 0.0, %v826
          %v828 = vpop.f32.mrb[0].mxu0
          %v829 = vpop.f32.mrb[0].mxu0
          %v830 = vadd.f32 0.0, %v829
          %v831 = vpop.f32.mrb[0].mxu0
          %832 = vmatprep.mubr.bf16.mxu0 %v525
          %833 = vmatmul.mubr.bf16.gmra.mrb[0].mxu0 %v524
          %v834 = vpop.f32.mrb[0].mxu0
          %v835 = vadd.f32 0.0, %v834
          %v836 = vpop.f32.mrb[0].mxu0
          %v837 = vpop.f32.mrb[0].mxu0
          %v838 = vadd.f32 0.0, %v837
          %v839 = vpop.f32.mrb[0].mxu0
          %840 = vmatprep.mubr.bf16.mxu0 %v527
          %841 = vmatmul.mubr.bf16.gmra.mrb[0].mxu0 %v526
          %v842 = vpop.f32.mrb[0].mxu0
          %v843 = vadd.f32 0.0, %v842
          %v844 = vpop.f32.mrb[0].mxu0
          %v845 = vpop.f32.mrb[0].mxu0
          %v846 = vadd.f32 0.0, %v845
          %v847 = vpop.f32.mrb[0].mxu0
          %848 = vmatprep.mubr.bf16.mxu0 %v529
          %849 = vmatmul.mubr.bf16.gmra.mrb[0].mxu0 %v528
          %v850 = vpop.f32.mrb[0].mxu0
          %v851 = vadd.f32 0.0, %v850
          %v852 = vpop.f32.mrb[0].mxu0
          %v853 = vpop.f32.mrb[0].mxu0
          %v854 = vadd.f32 0.0, %v853
          %v855 = vpop.f32.mrb[0].mxu0
          %856 = vmatprep.mubr.bf16.mxu0 %v531
          %857 = vmatmul.mubr.bf16.gmra.mrb[0].mxu0 %v530
          %v858 = vpop.f32.mrb[0].mxu0
          %v859 = vadd.f32 0.0, %v858
          %v860 = vpop.f32.mrb[0].mxu0
          %v861 = vpop.f32.mrb[0].mxu0
          %v862 = vadd.f32 0.0, %v861
          %v863 = vpop.f32.mrb[0].mxu0
          %864 = vmatprep.mubr.bf16.mxu0 %v533
          %865 = vmatmul.mubr.bf16.gmra.mrb[0].mxu0 %v532
          %v866 = vpop.f32.mrb[0].mxu0
          %v867 = vadd.f32 0.0, %v866
          %v868 = vpop.f32.mrb[0].mxu0
          %v869 = vpop.f32.mrb[0].mxu0
          %v870 = vadd.f32 0.0, %v869
          %v871 = vpop.f32.mrb[0].mxu0
          %872 = vmatprep.mubr.bf16.mxu0 %v535
          %873 = vmatmul.mubr.bf16.gmra.mrb[0].mxu0 %v534
          %v874 = vpop.f32.mrb[0].mxu0
          %v875 = vadd.f32 0.0, %v874
          %v876 = vpop.f32.mrb[0].mxu0
          %v877 = vpop.f32.mrb[0].mxu0
          %v878 = vadd.f32 0.0, %v877
          %v879 = vpop.f32.mrb[0].mxu0
          %880 = vmatprep.mubr.bf16.mxu0 %v537
          %881 = vmatmul.mubr.bf16.gmra.mrb[0].mxu0 %v536
          %v882 = vpop.f32.mrb[0].mxu0
          %v883 = vadd.f32 0.0, %v882
          %v884 = vpop.f32.mrb[0].mxu0
          %v885 = vpop.f32.mrb[0].mxu0
          %v886 = vadd.f32 0.0, %v885
          %v887 = vpop.f32.mrb[0].mxu0
          %888 = vmatprep.mubr.bf16.mxu0 %v539
          %889 = vmatmul.mubr.bf16.gmra.mrb[0].mxu0 %v538
          %v890 = vpop.f32.mrb[0].mxu0
          %v891 = vadd.f32 0.0, %v890
          %v892 = vpop.f32.mrb[0].mxu0
          %v893 = vpop.f32.mrb[0].mxu0
          %v894 = vadd.f32 0.0, %v893
          %v895 = vpop.f32.mrb[0].mxu0
          %896 = vmatprep.mubr.bf16.mxu0 %v541
          %897 = vmatmul.mubr.bf16.gmra.mrb[0].mxu0 %v540
          %v898 = vpop.f32.mrb[0].mxu0
          %v899 = vadd.f32 0.0, %v898
          %v900 = vpop.f32.mrb[0].mxu0
          %v901 = vpop.f32.mrb[0].mxu0
          %v902 = vadd.f32 0.0, %v901
          %v903 = vpop.f32.mrb[0].mxu0
          %904 = vmatprep.mubr.bf16.mxu0 %v543
          %905 = vmatmul.mubr.bf16.gmra.mrb[0].mxu0 %v542
          %v906 = vpop.f32.mrb[0].mxu0
          %v907 = vadd.f32 0.0, %v906
          %v908 = vpop.f32.mrb[0].mxu0
          %v909 = vpop.f32.mrb[0].mxu0
          %v910 = vadd.f32 0.0, %v909
          %v911 = vpop.f32.mrb[0].mxu0
          %912 = vmatprep.mubr.bf16.mxu0 %v545
          %913 = vmatmul.mubr.bf16.gmra.mrb[0].mxu0 %v544
          %v914 = vpop.f32.mrb[0].mxu0
          %v915 = vadd.f32 0.0, %v914
          %v916 = vpop.f32.mrb[0].mxu0
          %v917 = vpop.f32.mrb[0].mxu0
          %v918 = vadd.f32 0.0, %v917
          %v919 = vpop.f32.mrb[0].mxu0
          %920 = vmatprep.mubr.bf16.mxu0 %v547
          %921 = vmatmul.mubr.bf16.gmra.mrb[0].mxu0 %v546
          %v922 = vpop.f32.mrb[0].mxu0
          %v923 = vadd.f32 0.0, %v922
          %v924 = vpop.f32.mrb[0].mxu0
          %v925 = vpop.f32.mrb[0].mxu0
          %v926 = vadd.f32 0.0, %v925
          %v927 = vpop.f32.mrb[0].mxu0
          %928 = vmatprep.mubr.bf16.mxu0 %v549
          %929 = vmatmul.mubr.bf16.gmra.mrb[0].mxu0 %v548
          %v930 = vpop.f32.mrb[0].mxu0
          %v931 = vadd.f32 0.0, %v930
          %v932 = vpop.f32.mrb[0].mxu0
          %v933 = vpop.f32.mrb[0].mxu0
          %v934 = vadd.f32 0.0, %v933
          %v935 = vpop.f32.mrb[0].mxu0
          %936 = vmatprep.mubr.bf16.mxu0 %v551
          %937 = vmatmul.mubr.bf16.gmra.mrb[0].mxu0 %v550
          %v938 = vpop.f32.mrb[0].mxu0
          %v939 = vadd.f32 0.0, %v938
          %v940 = vpop.f32.mrb[0].mxu0
          %v941 = vpop.f32.mrb[0].mxu0
          %v942 = vadd.f32 0.0, %v941
          %v943 = vpop.f32.mrb[0].mxu0
          %944 = vmatprep.mubr.bf16.mxu0 %v553
          %945 = vmatmul.mubr.bf16.gmra.mrb[0].mxu0 %v552
          %v946 = vpop.f32.mrb[0].mxu0
          %v947 = vadd.f32 0.0, %v946
          %v948 = vpop.f32.mrb[0].mxu0
          %v949 = vpop.f32.mrb[0].mxu0
          %v950 = vadd.f32 0.0, %v949
          %v951 = vpop.f32.mrb[0].mxu0
          %952 = vmatprep.mubr.bf16.mxu0 %v555
          %953 = vmatmul.mubr.bf16.gmra.mrb[0].mxu0 %v554
          %v954 = vpop.f32.mrb[0].mxu0
          %v955 = vadd.f32 0.0, %v954
          %v956 = vpop.f32.mrb[0].mxu0
          %v957 = vpop.f32.mrb[0].mxu0
          %v958 = vadd.f32 0.0, %v957
          %v959 = vpop.f32.mrb[0].mxu0
          %960 = vmatprep.mubr.bf16.mxu0 %v557
          %961 = vmatmul.mubr.bf16.gmra.mrb[0].mxu0 %v556
          %v962 = vpop.f32.mrb[0].mxu0
          %v963 = vadd.f32 0.0, %v962
          %v964 = vpop.f32.mrb[0].mxu0
          %v965 = vpop.f32.mrb[0].mxu0
          %v966 = vadd.f32 0.0, %v965
          %v967 = vpop.f32.mrb[0].mxu0
          %968 = vmatprep.mubr.bf16.mxu0 %v559
          %969 = vmatmul.mubr.bf16.gmra.mrb[0].mxu0 %v558
          %v970 = vpop.f32.mrb[0].mxu0
          %v971 = vadd.f32 0.0, %v970
          %v972 = vpop.f32.mrb[0].mxu0
          %v973 = vpop.f32.mrb[0].mxu0
          %v974 = vadd.f32 0.0, %v973
          %v975 = vpop.f32.mrb[0].mxu0
          %976 = vdwg.mxu0
          %v977 = vld [vmem:[#allocation3] sm:$0xff]
          %v978 = vadd.f32 %v723, %v726
          %v979 = vadd.f32 %v978, %v731
          %v980 = vadd.f32 %v979, %v734
          %v981 = vadd.f32 %v980, %v739
          %v982 = vadd.f32 %v981, %v742
          %v983 = vadd.f32 %v982, %v747
          %v984 = vadd.f32 %v983, %v750
          %v985 = vadd.f32 %v984, %v755
          %v986 = vadd.f32 %v985, %v758
          %v987 = vadd.f32 %v986, %v763
          %v988 = vadd.f32 %v987, %v766
          %v989 = vadd.f32 %v988, %v771
          %v990 = vadd.f32 %v989, %v774
          %v991 = vadd.f32 %v990, %v779
          %v992 = vadd.f32 %v991, %v782
          %v993 = vadd.f32 %v992, %v787
          %v994 = vadd.f32 %v993, %v790
          %v995 = vadd.f32 %v994, %v795
          %v996 = vadd.f32 %v995, %v798
          %v997 = vadd.f32 %v996, %v803
          %v998 = vadd.f32 %v997, %v806
          %v999 = vadd.f32 %v998, %v811
          %v1000 = vadd.f32 %v999, %v814
          %v1001 = vadd.f32 %v1000, %v819
          %v1002 = vadd.f32 %v1001, %v822
          %v1003 = vadd.f32 %v1002, %v827
          %v1004 = vadd.f32 %v1003, %v830
          %v1005 = vadd.f32 %v1004, %v835
          %v1006 = vadd.f32 %v1005, %v838
          %v1007 = vadd.f32 %v1006, %v843
          %v1008 = vadd.f32 %v1007, %v846
          %v1009 = vadd.f32 %v1008, %v851
          %v1010 = vadd.f32 %v1009, %v854
          %v1011 = vadd.f32 %v1010, %v859
          %v1012 = vadd.f32 %v1011, %v862
          %v1013 = vadd.f32 %v1012, %v867
          %v1014 = vadd.f32 %v1013, %v870
          %v1015 = vadd.f32 %v1014, %v875
          %v1016 = vadd.f32 %v1015, %v878
          %v1017 = vadd.f32 %v1016, %v883
          %v1018 = vadd.f32 %v1017, %v886
          %v1019 = vadd.f32 %v1018, %v891
          %v1020 = vadd.f32 %v1019, %v894
          %v1021 = vadd.f32 %v1020, %v899
          %v1022 = vadd.f32 %v1021, %v902
          %v1023 = vadd.f32 %v1022, %v907
          %v1024 = vadd.f32 %v1023, %v910
          %v1025 = vadd.f32 %v1024, %v915
          %v1026 = vadd.f32 %v1025, %v918
          %v1027 = vadd.f32 %v1026, %v923
          %v1028 = vadd.f32 %v1027, %v926
          %v1029 = vadd.f32 %v1028, %v931
          %v1030 = vadd.f32 %v1029, %v934
          %v1031 = vadd.f32 %v1030, %v939
          %v1032 = vadd.f32 %v1031, %v942
          %v1033 = vadd.f32 %v1032, %v947
          %v1034 = vadd.f32 %v1033, %v950
          %v1035 = vadd.f32 %v1034, %v955
          %v1036 = vadd.f32 %v1035, %v958
          %v1037 = vadd.f32 %v1036, %v963
          %v1038 = vadd.f32 %v1037, %v966
          %v1039 = vadd.f32 %v1038, %v971
          %v1040 = vadd.f32 %v1039, %v974
          %v1041 = vadd.f32 %v977, %v1040
          %1042 = vst [vmem:[#allocation3] sm:$0xff] %v1041
          %v1043 = vld [vmem:[#allocation4] sm:$0xff]
          %v1044 = vmul.f32 %v723, %v723
          %v1045 = vmul.f32 %v726, %v726
          %v1046 = vmul.f32 %v731, %v731
          %v1047 = vmul.f32 %v734, %v734
          %v1048 = vmul.f32 %v739, %v739
          %v1049 = vmul.f32 %v742, %v742
          %v1050 = vmul.f32 %v747, %v747
          %v1051 = vmul.f32 %v750, %v750
          %v1052 = vmul.f32 %v755, %v755
          %v1053 = vmul.f32 %v758, %v758
          %v1054 = vmul.f32 %v763, %v763
          %v1055 = vmul.f32 %v766, %v766
          %v1056 = vmul.f32 %v771, %v771
          %v1057 = vmul.f32 %v774, %v774
          %v1058 = vmul.f32 %v779, %v779
          %v1059 = vmul.f32 %v782, %v782
          %v1060 = vmul.f32 %v787, %v787
          %v1061 = vmul.f32 %v790, %v790
          %v1062 = vmul.f32 %v795, %v795
          %v1063 = vmul.f32 %v798, %v798
          %v1064 = vmul.f32 %v803, %v803
          %v1065 = vmul.f32 %v806, %v806
          %v1066 = vmul.f32 %v811, %v811
          %v1067 = vmul.f32 %v814, %v814
          %v1068 = vmul.f32 %v819, %v819
          %v1069 = vmul.f32 %v822, %v822
          %v1070 = vmul.f32 %v827, %v827
          %v1071 = vmul.f32 %v830, %v830
          %v1072 = vmul.f32 %v835, %v835
          %v1073 = vmul.f32 %v838, %v838
          %v1074 = vmul.f32 %v843, %v843
          %v1075 = vmul.f32 %v846, %v846
          %v1076 = vmul.f32 %v851, %v851
          %v1077 = vmul.f32 %v854, %v854
          %v1078 = vmul.f32 %v859, %v859
          %v1079 = vmul.f32 %v862, %v862
          %v1080 = vmul.f32 %v867, %v867
          %v1081 = vmul.f32 %v870, %v870
          %v1082 = vmul.f32 %v875, %v875
          %v1083 = vmul.f32 %v878, %v878
          %v1084 = vmul.f32 %v883, %v883
          %v1085 = vmul.f32 %v886, %v886
          %v1086 = vmul.f32 %v891, %v891
          %v1087 = vmul.f32 %v894, %v894
          %v1088 = vmul.f32 %v899, %v899
          %v1089 = vmul.f32 %v902, %v902
          %v1090 = vmul.f32 %v907, %v907
          %v1091 = vmul.f32 %v910, %v910
          %v1092 = vmul.f32 %v915, %v915
          %v1093 = vmul.f32 %v918, %v918
          %v1094 = vmul.f32 %v923, %v923
          %v1095 = vmul.f32 %v926, %v926
          %v1096 = vmul.f32 %v931, %v931
          %v1097 = vmul.f32 %v934, %v934
          %v1098 = vmul.f32 %v939, %v939
          %v1099 = vmul.f32 %v942, %v942
          %v1100 = vmul.f32 %v947, %v947
          %v1101 = vmul.f32 %v950, %v950
          %v1102 = vmul.f32 %v955, %v955
          %v1103 = vmul.f32 %v958, %v958
          %v1104 = vmul.f32 %v963, %v963
          %v1105 = vmul.f32 %v966, %v966
          %v1106 = vmul.f32 %v971, %v971
          %v1107 = vmul.f32 %v974, %v974
          %v1108 = vadd.f32 %v1044, %v1045
          %v1109 = vadd.f32 %v1108, %v1046
          %v1110 = vadd.f32 %v1109, %v1047
          %v1111 = vadd.f32 %v1110, %v1048
          %v1112 = vadd.f32 %v1111, %v1049
          %v1113 = vadd.f32 %v1112, %v1050
          %v1114 = vadd.f32 %v1113, %v1051
          %v1115 = vadd.f32 %v1114, %v1052
          %v1116 = vadd.f32 %v1115, %v1053
          %v1117 = vadd.f32 %v1116, %v1054
          %v1118 = vadd.f32 %v1117, %v1055
          %v1119 = vadd.f32 %v1118, %v1056
          %v1120 = vadd.f32 %v1119, %v1057
          %v1121 = vadd.f32 %v1120, %v1058
          %v1122 = vadd.f32 %v1121, %v1059
          %v1123 = vadd.f32 %v1122, %v1060
          %v1124 = vadd.f32 %v1123, %v1061
          %v1125 = vadd.f32 %v1124, %v1062
          %v1126 = vadd.f32 %v1125, %v1063
          %v1127 = vadd.f32 %v1126, %v1064
          %v1128 = vadd.f32 %v1127, %v1065
          %v1129 = vadd.f32 %v1128, %v1066
          %v1130 = vadd.f32 %v1129, %v1067
          %v1131 = vadd.f32 %v1130, %v1068
          %v1132 = vadd.f32 %v1131, %v1069
          %v1133 = vadd.f32 %v1132, %v1070
          %v1134 = vadd.f32 %v1133, %v1071
          %v1135 = vadd.f32 %v1134, %v1072
          %v1136 = vadd.f32 %v1135, %v1073
          %v1137 = vadd.f32 %v1136, %v1074
          %v1138 = vadd.f32 %v1137, %v1075
          %v1139 = vadd.f32 %v1138, %v1076
          %v1140 = vadd.f32 %v1139, %v1077
          %v1141 = vadd.f32 %v1140, %v1078
          %v1142 = vadd.f32 %v1141, %v1079
          %v1143 = vadd.f32 %v1142, %v1080
          %v1144 = vadd.f32 %v1143, %v1081
          %v1145 = vadd.f32 %v1144, %v1082
          %v1146 = vadd.f32 %v1145, %v1083
          %v1147 = vadd.f32 %v1146, %v1084
          %v1148 = vadd.f32 %v1147, %v1085
          %v1149 = vadd.f32 %v1148, %v1086
          %v1150 = vadd.f32 %v1149, %v1087
          %v1151 = vadd.f32 %v1150, %v1088
          %v1152 = vadd.f32 %v1151, %v1089
          %v1153 = vadd.f32 %v1152, %v1090
          %v1154 = vadd.f32 %v1153, %v1091
          %v1155 = vadd.f32 %v1154, %v1092
          %v1156 = vadd.f32 %v1155, %v1093
          %v1157 = vadd.f32 %v1156, %v1094
          %v1158 = vadd.f32 %v1157, %v1095
          %v1159 = vadd.f32 %v1158, %v1096
          %v1160 = vadd.f32 %v1159, %v1097
          %v1161 = vadd.f32 %v1160, %v1098
          %v1162 = vadd.f32 %v1161, %v1099
          %v1163 = vadd.f32 %v1162, %v1100
          %v1164 = vadd.f32 %v1163, %v1101
          %v1165 = vadd.f32 %v1164, %v1102
          %v1166 = vadd.f32 %v1165, %v1103
          %v1167 = vadd.f32 %v1166, %v1104
          %v1168 = vadd.f32 %v1167, %v1105
          %v1169 = vadd.f32 %v1168, %v1106
          %v1170 = vadd.f32 %v1169, %v1107
          %v1171 = vadd.f32 %v1043, %v1170
          %1172 = vst [vmem:[#allocation4] sm:$0xff] %v1171
          %v1173 = vld [vmem:[%s2] sm:$0x1]
          %v1175 = vlaneseq
          %v1176 = vshrl.u32 %v1175, 7
          %v1177 = vsub.s32 0, %v1176
          %v1178 = vrot.slane %v1173, %v1177
          %v1180 = vadd.f32 %v723, %v1178
          %v1181 = vadd.f32 %v726, %v1178
          %v1182 = vadd.f32 %v731, %v1178
          %v1183 = vadd.f32 %v734, %v1178
          %v1184 = vadd.f32 %v739, %v1178
          %v1185 = vadd.f32 %v742, %v1178
          %v1186 = vadd.f32 %v747, %v1178
          %v1187 = vadd.f32 %v750, %v1178
          %v1188 = vadd.f32 %v755, %v1178
          %v1189 = vadd.f32 %v758, %v1178
          %v1190 = vadd.f32 %v763, %v1178
          %v1191 = vadd.f32 %v766, %v1178
          %v1192 = vadd.f32 %v771, %v1178
          %v1193 = vadd.f32 %v774, %v1178
          %v1194 = vadd.f32 %v779, %v1178
          %v1195 = vadd.f32 %v782, %v1178
          %v1196 = vadd.f32 %v787, %v1178
          %v1197 = vadd.f32 %v790, %v1178
          %v1198 = vadd.f32 %v795, %v1178
          %v1199 = vadd.f32 %v798, %v1178
          %v1200 = vadd.f32 %v803, %v1178
          %v1201 = vadd.f32 %v806, %v1178
          %v1202 = vadd.f32 %v811, %v1178
          %v1203 = vadd.f32 %v814, %v1178
          %v1204 = vadd.f32 %v819, %v1178
          %v1205 = vadd.f32 %v822, %v1178
          %v1206 = vadd.f32 %v827, %v1178
          %v1207 = vadd.f32 %v830, %v1178
          %v1208 = vadd.f32 %v835, %v1178
          %v1209 = vadd.f32 %v838, %v1178
          %v1210 = vadd.f32 %v843, %v1178
          %v1211 = vadd.f32 %v846, %v1178
          %v1212 = vadd.f32 %v851, %v1178
          %v1213 = vadd.f32 %v854, %v1178
          %v1214 = vadd.f32 %v859, %v1178
          %v1215 = vadd.f32 %v862, %v1178
          %v1216 = vadd.f32 %v867, %v1178
          %v1217 = vadd.f32 %v870, %v1178
          %v1218 = vadd.f32 %v875, %v1178
          %v1219 = vadd.f32 %v878, %v1178
          %v1220 = vadd.f32 %v883, %v1178
          %v1221 = vadd.f32 %v886, %v1178
          %v1222 = vadd.f32 %v891, %v1178
          %v1223 = vadd.f32 %v894, %v1178
          %v1224 = vadd.f32 %v899, %v1178
          %v1225 = vadd.f32 %v902, %v1178
          %v1226 = vadd.f32 %v907, %v1178
          %v1227 = vadd.f32 %v910, %v1178
          %v1228 = vadd.f32 %v915, %v1178
          %v1229 = vadd.f32 %v918, %v1178
          %v1230 = vadd.f32 %v923, %v1178
          %v1231 = vadd.f32 %v926, %v1178
          %v1232 = vadd.f32 %v931, %v1178
          %v1233 = vadd.f32 %v934, %v1178
          %v1234 = vadd.f32 %v939, %v1178
          %v1235 = vadd.f32 %v942, %v1178
          %v1236 = vadd.f32 %v947, %v1178
          %v1237 = vadd.f32 %v950, %v1178
          %v1238 = vadd.f32 %v955, %v1178
          %v1239 = vadd.f32 %v958, %v1178
          %v1240 = vadd.f32 %v963, %v1178
          %v1241 = vadd.f32 %v966, %v1178
          %v1242 = vadd.f32 %v971, %v1178
          %v1243 = vadd.f32 %v974, %v1178
          %v1244 = vpack.c.bf16 %v1181, %v1180
          %v1245 = vpack.c.bf16 %v1183, %v1182
          %v1246 = vpack.c.bf16 %v1185, %v1184
          %v1247 = vpack.c.bf16 %v1187, %v1186
          %v1248 = vpack.c.bf16 %v1189, %v1188
          %v1249 = vpack.c.bf16 %v1191, %v1190
          %v1250 = vpack.c.bf16 %v1193, %v1192
          %v1251 = vpack.c.bf16 %v1195, %v1194
          %v1252 = vpack.c.bf16 %v1197, %v1196
          %v1253 = vpack.c.bf16 %v1199, %v1198
          %v1254 = vpack.c.bf16 %v1201, %v1200
          %v1255 = vpack.c.bf16 %v1203, %v1202
          %v1256 = vpack.c.bf16 %v1205, %v1204
          %v1257 = vpack.c.bf16 %v1207, %v1206
          %v1258 = vpack.c.bf16 %v1209, %v1208
          %v1259 = vpack.c.bf16 %v1211, %v1210
          %v1260 = vpack.c.bf16 %v1213, %v1212
          %v1261 = vpack.c.bf16 %v1215, %v1214
          %v1262 = vpack.c.bf16 %v1217, %v1216
          %v1263 = vpack.c.bf16 %v1219, %v1218
          %v1264 = vpack.c.bf16 %v1221, %v1220
          %v1265 = vpack.c.bf16 %v1223, %v1222
          %v1266 = vpack.c.bf16 %v1225, %v1224
          %v1267 = vpack.c.bf16 %v1227, %v1226
          %v1268 = vpack.c.bf16 %v1229, %v1228
          %v1269 = vpack.c.bf16 %v1231, %v1230
          %v1270 = vpack.c.bf16 %v1233, %v1232
          %v1271 = vpack.c.bf16 %v1235, %v1234
          %v1272 = vpack.c.bf16 %v1237, %v1236
          %v1273 = vpack.c.bf16 %v1239, %v1238
          %v1274 = vpack.c.bf16 %v1241, %v1240
          %v1275 = vpack.c.bf16 %v1243, %v1242
          %s1276 = smul.u32 %s30, 32
          %s1277 = smul.addr %s1276, 8
          %s1278 = scalar_lea.vmem [#allocation2], %s1277
          %1279 = vst [vmem:[%s1278] sm:$0xff] %v1244
          %1280 = vst [vmem:[%s1278 + $0x8] sm:$0xff] %v1245
          %1281 = vst [vmem:[%s1278 + $0x10] sm:$0xff] %v1246
          %1282 = vst [vmem:[%s1278 + $0x18] sm:$0xff] %v1247
          %1283 = vst [vmem:[%s1278 + $0x20] sm:$0xff] %v1248
          %1284 = vst [vmem:[%s1278 + $0x28] sm:$0xff] %v1249
          %1285 = vst [vmem:[%s1278 + $0x30] sm:$0xff] %v1250
          %1286 = vst [vmem:[%s1278 + $0x38] sm:$0xff] %v1251
          %1287 = vst [vmem:[%s1278 + $0x40] sm:$0xff] %v1252
          %1288 = vst [vmem:[%s1278 + $0x48] sm:$0xff] %v1253
          %1289 = vst [vmem:[%s1278 + $0x50] sm:$0xff] %v1254
          %1290 = vst [vmem:[%s1278 + $0x58] sm:$0xff] %v1255
          %1291 = vst [vmem:[%s1278 + $0x60] sm:$0xff] %v1256
          %1292 = vst [vmem:[%s1278 + $0x68] sm:$0xff] %v1257
          %1293 = vst [vmem:[%s1278 + $0x70] sm:$0xff] %v1258
          %1294 = vst [vmem:[%s1278 + $0x78] sm:$0xff] %v1259
          %1295 = vst [vmem:[%s1278 + $0x80] sm:$0xff] %v1260
          %1296 = vst [vmem:[%s1278 + $0x88] sm:$0xff] %v1261
          %1297 = vst [vmem:[%s1278 + $0x90] sm:$0xff] %v1262
          %1298 = vst [vmem:[%s1278 + $0x98] sm:$0xff] %v1263
          %1299 = vst [vmem:[%s1278 + $0xa0] sm:$0xff] %v1264
          %1300 = vst [vmem:[%s1278 + $0xa8] sm:$0xff] %v1265
          %1301 = vst [vmem:[%s1278 + $0xb0] sm:$0xff] %v1266
          %1302 = vst [vmem:[%s1278 + $0xb8] sm:$0xff] %v1267
          %1303 = vst [vmem:[%s1278 + $0xc0] sm:$0xff] %v1268
          %1304 = vst [vmem:[%s1278 + $0xc8] sm:$0xff] %v1269
          %1305 = vst [vmem:[%s1278 + $0xd0] sm:$0xff] %v1270
          %1306 = vst [vmem:[%s1278 + $0xd8] sm:$0xff] %v1271
          %1307 = vst [vmem:[%s1278 + $0xe0] sm:$0xff] %v1272
          %1308 = vst [vmem:[%s1278 + $0xe8] sm:$0xff] %v1273
          %1309 = vst [vmem:[%s1278 + $0xf0] sm:$0xff] %v1274
          %1310 = vst [vmem:[%s1278 + $0xf8] sm:$0xff] %v1275
        $region68: #{tpu_custom_call.1} parent=47 // pred_fallthru
          _
        %p1311 = scmp.eq.s32.totalorder %s29, 1
        %p1312 = pnand %p1311, %p358
        %p1313 = pneg %p1312
        // Predicated region
        $region69: #{tpu_custom_call.1} parent=47 // pred_check
          _
        $region70: #{tpu_custom_call.1} parent=47 // pred_check_branch
          %1315 = sbr.rel (%p1312) target = $region72
        $region71: #{tpu_custom_call.1} parent=47 // pred_region
          %v1316 = vld [vmem:[#allocation3] sm:$0xff]
          %v1317 = vrot.slane %v1316, 4
          %v1318 = vadd.f32 %v1316, %v1317
          %v1319 = vrot.slane %v1318, 2
          %v1320 = vadd.f32 %v1318, %v1319
          %v1321 = vrot.slane %v1320, 1
          %v1322 = vadd.f32 %v1320, %v1321
          %v1323 = vmul.f32 %v1322, 0.0009765625
          %v1324 = vld [vmem:[#allocation4] sm:$0xff]
          %v1325 = vrot.slane %v1324, 4
          %v1326 = vadd.f32 %v1324, %v1325
          %v1327 = vrot.slane %v1326, 2
          %v1328 = vadd.f32 %v1326, %v1327
          %v1329 = vrot.slane %v1328, 1
          %v1330 = vadd.f32 %v1328, %v1329
          %v1331 = vmul.f32 %v1330, 0.0009765625
          %v1332 = vmul.f32 %v1323, %v1323
          %v1333 = vsub.f32 %v1331, %v1332
          %v1334 = vmax.f32 %v1333, 0.0
          %v1335 = vadd.f32 %v1334, 1e-05
          %v1336 = vrsqrt.pop %v1335
          %v1337 = vld [vmem:[%s2] sm:$0x1]
          %v1338 = vadd.f32 %v1323, %v1337
          %v1339 = vld [vmem:[%s3] sm:$0x1]
          %v1340 = vmul.f32 %v1339, %v1336
          %1341 = vst [vmem:[#allocation5] sm:$0x1] %v1340
          %v1342 = vld [vmem:[%s4] sm:$0x1]
          %v1343 = vld [vmem:[%s3] sm:$0x1]
          %v1344 = vmul.f32 %v1338, %v1343
          %v1345 = vmul.f32 %v1344, %v1336
          %v1346 = vsub.f32 %v1342, %v1345
          %1347 = vst [vmem:[#allocation6] sm:$0x1] %v1346
        $region72: #{tpu_custom_call.1} parent=47 // pred_fallthru
          _
        // Predicated region
        $region73: #{tpu_custom_call.1} parent=47 // pred_check
          %p1348 = pneg %p1311
        $region74: #{tpu_custom_call.1} parent=47 // pred_check_branch
          %1350 = sbr.rel (%p1348) target = $region76
        $region75: #{tpu_custom_call.1} parent=47 // pred_region
          %s1351 = smul.u32 %s30, 32
          %s1352 = smul.addr %s1351, 8
          %s1353 = scalar_lea.vmem [#allocation2], %s1352
          %v1354 = vld [vmem:[%s1353] sm:$0xff]
          %v1355 = vld [vmem:[%s1353 + $0x8] sm:$0xff]
          %v1356 = vld [vmem:[%s1353 + $0x10] sm:$0xff]
          %v1357 = vld [vmem:[%s1353 + $0x18] sm:$0xff]
          %v1358 = vld [vmem:[%s1353 + $0x20] sm:$0xff]
          %v1359 = vld [vmem:[%s1353 + $0x28] sm:$0xff]
          %v1360 = vld [vmem:[%s1353 + $0x30] sm:$0xff]
          %v1361 = vld [vmem:[%s1353 + $0x38] sm:$0xff]
          %v1362 = vld [vmem:[%s1353 + $0x40] sm:$0xff]
          %v1363 = vld [vmem:[%s1353 + $0x48] sm:$0xff]
          %v1364 = vld [vmem:[%s1353 + $0x50] sm:$0xff]
          %v1365 = vld [vmem:[%s1353 + $0x58] sm:$0xff]
          %v1366 = vld [vmem:[%s1353 + $0x60] sm:$0xff]
          %v1367 = vld [vmem:[%s1353 + $0x68] sm:$0xff]
          %v1368 = vld [vmem:[%s1353 + $0x70] sm:$0xff]
          %v1369 = vld [vmem:[%s1353 + $0x78] sm:$0xff]
          %v1370 = vld [vmem:[%s1353 + $0x80] sm:$0xff]
          %v1371 = vld [vmem:[%s1353 + $0x88] sm:$0xff]
          %v1372 = vld [vmem:[%s1353 + $0x90] sm:$0xff]
          %v1373 = vld [vmem:[%s1353 + $0x98] sm:$0xff]
          %v1374 = vld [vmem:[%s1353 + $0xa0] sm:$0xff]
          %v1375 = vld [vmem:[%s1353 + $0xa8] sm:$0xff]
          %v1376 = vld [vmem:[%s1353 + $0xb0] sm:$0xff]
          %v1377 = vld [vmem:[%s1353 + $0xb8] sm:$0xff]
          %v1378 = vld [vmem:[%s1353 + $0xc0] sm:$0xff]
          %v1379 = vld [vmem:[%s1353 + $0xc8] sm:$0xff]
          %v1380 = vld [vmem:[%s1353 + $0xd0] sm:$0xff]
          %v1381 = vld [vmem:[%s1353 + $0xd8] sm:$0xff]
          %v1382 = vld [vmem:[%s1353 + $0xe0] sm:$0xff]
          %v1383 = vld [vmem:[%s1353 + $0xe8] sm:$0xff]
          %v1384 = vld [vmem:[%s1353 + $0xf0] sm:$0xff]
          %v1385 = vld [vmem:[%s1353 + $0xf8] sm:$0xff]
          %v1386 = vunpack.c.l.bf16 %v1354
          %v1387 = vunpack.c.h.bf16 %v1354
          %v1388 = vunpack.c.l.bf16 %v1355
          %v1389 = vunpack.c.h.bf16 %v1355
          %v1390 = vunpack.c.l.bf16 %v1356
          %v1391 = vunpack.c.h.bf16 %v1356
          %v1392 = vunpack.c.l.bf16 %v1357
          %v1393 = vunpack.c.h.bf16 %v1357
          %v1394 = vunpack.c.l.bf16 %v1358
          %v1395 = vunpack.c.h.bf16 %v1358
          %v1396 = vunpack.c.l.bf16 %v1359
          %v1397 = vunpack.c.h.bf16 %v1359
          %v1398 = vunpack.c.l.bf16 %v1360
          %v1399 = vunpack.c.h.bf16 %v1360
          %v1400 = vunpack.c.l.bf16 %v1361
          %v1401 = vunpack.c.h.bf16 %v1361
          %v1402 = vunpack.c.l.bf16 %v1362
          %v1403 = vunpack.c.h.bf16 %v1362
          %v1404 = vunpack.c.l.bf16 %v1363
          %v1405 = vunpack.c.h.bf16 %v1363
          %v1406 = vunpack.c.l.bf16 %v1364
          %v1407 = vunpack.c.h.bf16 %v1364
          %v1408 = vunpack.c.l.bf16 %v1365
          %v1409 = vunpack.c.h.bf16 %v1365
          %v1410 = vunpack.c.l.bf16 %v1366
          %v1411 = vunpack.c.h.bf16 %v1366
          %v1412 = vunpack.c.l.bf16 %v1367
          %v1413 = vunpack.c.h.bf16 %v1367
          %v1414 = vunpack.c.l.bf16 %v1368
          %v1415 = vunpack.c.h.bf16 %v1368
          %v1416 = vunpack.c.l.bf16 %v1369
          %v1417 = vunpack.c.h.bf16 %v1369
          %v1418 = vunpack.c.l.bf16 %v1370
          %v1419 = vunpack.c.h.bf16 %v1370
          %v1420 = vunpack.c.l.bf16 %v1371
          %v1421 = vunpack.c.h.bf16 %v1371
          %v1422 = vunpack.c.l.bf16 %v1372
          %v1423 = vunpack.c.h.bf16 %v1372
          %v1424 = vunpack.c.l.bf16 %v1373
          %v1425 = vunpack.c.h.bf16 %v1373
          %v1426 = vunpack.c.l.bf16 %v1374
          %v1427 = vunpack.c.h.bf16 %v1374
          %v1428 = vunpack.c.l.bf16 %v1375
          %v1429 = vunpack.c.h.bf16 %v1375
          %v1430 = vunpack.c.l.bf16 %v1376
          %v1431 = vunpack.c.h.bf16 %v1376
          %v1432 = vunpack.c.l.bf16 %v1377
          %v1433 = vunpack.c.h.bf16 %v1377
          %v1434 = vunpack.c.l.bf16 %v1378
          %v1435 = vunpack.c.h.bf16 %v1378
          %v1436 = vunpack.c.l.bf16 %v1379
          %v1437 = vunpack.c.h.bf16 %v1379
          %v1438 = vunpack.c.l.bf16 %v1380
          %v1439 = vunpack.c.h.bf16 %v1380
          %v1440 = vunpack.c.l.bf16 %v1381
          %v1441 = vunpack.c.h.bf16 %v1381
          %v1442 = vunpack.c.l.bf16 %v1382
          %v1443 = vunpack.c.h.bf16 %v1382
          %v1444 = vunpack.c.l.bf16 %v1383
          %v1445 = vunpack.c.h.bf16 %v1383
          %v1446 = vunpack.c.l.bf16 %v1384
          %v1447 = vunpack.c.h.bf16 %v1384
          %v1448 = vunpack.c.l.bf16 %v1385
          %v1449 = vunpack.c.h.bf16 %v1385
          %v1450 = vld [vmem:[#allocation5] sm:$0x1]
          %v1452 = vlaneseq
          %v1453 = vshrl.u32 %v1452, 7
          %v1454 = vsub.s32 0, %v1453
          %v1455 = vrot.slane %v1450, %v1454
          %v1457 = vmul.f32 %v1386, %v1455
          %v1458 = vmul.f32 %v1387, %v1455
          %v1459 = vmul.f32 %v1388, %v1455
          %v1460 = vmul.f32 %v1389, %v1455
          %v1461 = vmul.f32 %v1390, %v1455
          %v1462 = vmul.f32 %v1391, %v1455
          %v1463 = vmul.f32 %v1392, %v1455
          %v1464 = vmul.f32 %v1393, %v1455
          %v1465 = vmul.f32 %v1394, %v1455
          %v1466 = vmul.f32 %v1395, %v1455
          %v1467 = vmul.f32 %v1396, %v1455
          %v1468 = vmul.f32 %v1397, %v1455
          %v1469 = vmul.f32 %v1398, %v1455
          %v1470 = vmul.f32 %v1399, %v1455
          %v1471 = vmul.f32 %v1400, %v1455
          %v1472 = vmul.f32 %v1401, %v1455
          %v1473 = vmul.f32 %v1402, %v1455
          %v1474 = vmul.f32 %v1403, %v1455
          %v1475 = vmul.f32 %v1404, %v1455
          %v1476 = vmul.f32 %v1405, %v1455
          %v1477 = vmul.f32 %v1406, %v1455
          %v1478 = vmul.f32 %v1407, %v1455
          %v1479 = vmul.f32 %v1408, %v1455
          %v1480 = vmul.f32 %v1409, %v1455
          %v1481 = vmul.f32 %v1410, %v1455
          %v1482 = vmul.f32 %v1411, %v1455
          %v1483 = vmul.f32 %v1412, %v1455
          %v1484 = vmul.f32 %v1413, %v1455
          %v1485 = vmul.f32 %v1414, %v1455
          %v1486 = vmul.f32 %v1415, %v1455
          %v1487 = vmul.f32 %v1416, %v1455
          %v1488 = vmul.f32 %v1417, %v1455
          %v1489 = vmul.f32 %v1418, %v1455
          %v1490 = vmul.f32 %v1419, %v1455
          %v1491 = vmul.f32 %v1420, %v1455
          %v1492 = vmul.f32 %v1421, %v1455
          %v1493 = vmul.f32 %v1422, %v1455
          %v1494 = vmul.f32 %v1423, %v1455
          %v1495 = vmul.f32 %v1424, %v1455
          %v1496 = vmul.f32 %v1425, %v1455
          %v1497 = vmul.f32 %v1426, %v1455
          %v1498 = vmul.f32 %v1427, %v1455
          %v1499 = vmul.f32 %v1428, %v1455
          %v1500 = vmul.f32 %v1429, %v1455
          %v1501 = vmul.f32 %v1430, %v1455
          %v1502 = vmul.f32 %v1431, %v1455
          %v1503 = vmul.f32 %v1432, %v1455
          %v1504 = vmul.f32 %v1433, %v1455
          %v1505 = vmul.f32 %v1434, %v1455
          %v1506 = vmul.f32 %v1435, %v1455
          %v1507 = vmul.f32 %v1436, %v1455
          %v1508 = vmul.f32 %v1437, %v1455
          %v1509 = vmul.f32 %v1438, %v1455
          %v1510 = vmul.f32 %v1439, %v1455
          %v1511 = vmul.f32 %v1440, %v1455
          %v1512 = vmul.f32 %v1441, %v1455
          %v1513 = vmul.f32 %v1442, %v1455
          %v1514 = vmul.f32 %v1443, %v1455
          %v1515 = vmul.f32 %v1444, %v1455
          %v1516 = vmul.f32 %v1445, %v1455
          %v1517 = vmul.f32 %v1446, %v1455
          %v1518 = vmul.f32 %v1447, %v1455
          %v1519 = vmul.f32 %v1448, %v1455
          %v1520 = vmul.f32 %v1449, %v1455
          %v1521 = vld [vmem:[#allocation6] sm:$0x1]
          %v1523 = vlaneseq
          %v1524 = vshrl.u32 %v1523, 7
          %v1525 = vsub.s32 0, %v1524
          %v1526 = vrot.slane %v1521, %v1525
          %v1528 = vadd.f32 %v1457, %v1526
          %v1529 = vadd.f32 %v1458, %v1526
          %v1530 = vadd.f32 %v1459, %v1526
          %v1531 = vadd.f32 %v1460, %v1526
          %v1532 = vadd.f32 %v1461, %v1526
          %v1533 = vadd.f32 %v1462, %v1526
          %v1534 = vadd.f32 %v1463, %v1526
          %v1535 = vadd.f32 %v1464, %v1526
          %v1536 = vadd.f32 %v1465, %v1526
          %v1537 = vadd.f32 %v1466, %v1526
          %v1538 = vadd.f32 %v1467, %v1526
          %v1539 = vadd.f32 %v1468, %v1526
          %v1540 = vadd.f32 %v1469, %v1526
          %v1541 = vadd.f32 %v1470, %v1526
          %v1542 = vadd.f32 %v1471, %v1526
          %v1543 = vadd.f32 %v1472, %v1526
          %v1544 = vadd.f32 %v1473, %v1526
          %v1545 = vadd.f32 %v1474, %v1526
          %v1546 = vadd.f32 %v1475, %v1526
          %v1547 = vadd.f32 %v1476, %v1526
          %v1548 = vadd.f32 %v1477, %v1526
          %v1549 = vadd.f32 %v1478, %v1526
          %v1550 = vadd.f32 %v1479, %v1526
          %v1551 = vadd.f32 %v1480, %v1526
          %v1552 = vadd.f32 %v1481, %v1526
          %v1553 = vadd.f32 %v1482, %v1526
          %v1554 = vadd.f32 %v1483, %v1526
          %v1555 = vadd.f32 %v1484, %v1526
          %v1556 = vadd.f32 %v1485, %v1526
          %v1557 = vadd.f32 %v1486, %v1526
          %v1558 = vadd.f32 %v1487, %v1526
          %v1559 = vadd.f32 %v1488, %v1526
          %v1560 = vadd.f32 %v1489, %v1526
          %v1561 = vadd.f32 %v1490, %v1526
          %v1562 = vadd.f32 %v1491, %v1526
          %v1563 = vadd.f32 %v1492, %v1526
          %v1564 = vadd.f32 %v1493, %v1526
          %v1565 = vadd.f32 %v1494, %v1526
          %v1566 = vadd.f32 %v1495, %v1526
          %v1567 = vadd.f32 %v1496, %v1526
          %v1568 = vadd.f32 %v1497, %v1526
          %v1569 = vadd.f32 %v1498, %v1526
          %v1570 = vadd.f32 %v1499, %v1526
          %v1571 = vadd.f32 %v1500, %v1526
          %v1572 = vadd.f32 %v1501, %v1526
          %v1573 = vadd.f32 %v1502, %v1526
          %v1574 = vadd.f32 %v1503, %v1526
          %v1575 = vadd.f32 %v1504, %v1526
          %v1576 = vadd.f32 %v1505, %v1526
          %v1577 = vadd.f32 %v1506, %v1526
          %v1578 = vadd.f32 %v1507, %v1526
          %v1579 = vadd.f32 %v1508, %v1526
          %v1580 = vadd.f32 %v1509, %v1526
          %v1581 = vadd.f32 %v1510, %v1526
          %v1582 = vadd.f32 %v1511, %v1526
          %v1583 = vadd.f32 %v1512, %v1526
          %v1584 = vadd.f32 %v1513, %v1526
          %v1585 = vadd.f32 %v1514, %v1526
          %v1586 = vadd.f32 %v1515, %v1526
          %v1587 = vadd.f32 %v1516, %v1526
          %v1588 = vadd.f32 %v1517, %v1526
          %v1589 = vadd.f32 %v1518, %v1526
          %v1590 = vadd.f32 %v1519, %v1526
          %v1591 = vadd.f32 %v1520, %v1526
          %v1592 = vmax.f32 %v1528, 0.0
          %v1593 = vmax.f32 %v1529, 0.0
          %v1594 = vmax.f32 %v1530, 0.0
          %v1595 = vmax.f32 %v1531, 0.0
          %v1596 = vmax.f32 %v1532, 0.0
          %v1597 = vmax.f32 %v1533, 0.0
          %v1598 = vmax.f32 %v1534, 0.0
          %v1599 = vmax.f32 %v1535, 0.0
          %v1600 = vmax.f32 %v1536, 0.0
          %v1601 = vmax.f32 %v1537, 0.0
          %v1602 = vmax.f32 %v1538, 0.0
          %v1603 = vmax.f32 %v1539, 0.0
          %v1604 = vmax.f32 %v1540, 0.0
          %v1605 = vmax.f32 %v1541, 0.0
          %v1606 = vmax.f32 %v1542, 0.0
          %v1607 = vmax.f32 %v1543, 0.0
          %v1608 = vmax.f32 %v1544, 0.0
          %v1609 = vmax.f32 %v1545, 0.0
          %v1610 = vmax.f32 %v1546, 0.0
          %v1611 = vmax.f32 %v1547, 0.0
          %v1612 = vmax.f32 %v1548, 0.0
          %v1613 = vmax.f32 %v1549, 0.0
          %v1614 = vmax.f32 %v1550, 0.0
          %v1615 = vmax.f32 %v1551, 0.0
          %v1616 = vmax.f32 %v1552, 0.0
          %v1617 = vmax.f32 %v1553, 0.0
          %v1618 = vmax.f32 %v1554, 0.0
          %v1619 = vmax.f32 %v1555, 0.0
          %v1620 = vmax.f32 %v1556, 0.0
          %v1621 = vmax.f32 %v1557, 0.0
          %v1622 = vmax.f32 %v1558, 0.0
          %v1623 = vmax.f32 %v1559, 0.0
          %v1624 = vmax.f32 %v1560, 0.0
          %v1625 = vmax.f32 %v1561, 0.0
          %v1626 = vmax.f32 %v1562, 0.0
          %v1627 = vmax.f32 %v1563, 0.0
          %v1628 = vmax.f32 %v1564, 0.0
          %v1629 = vmax.f32 %v1565, 0.0
          %v1630 = vmax.f32 %v1566, 0.0
          %v1631 = vmax.f32 %v1567, 0.0
          %v1632 = vmax.f32 %v1568, 0.0
          %v1633 = vmax.f32 %v1569, 0.0
          %v1634 = vmax.f32 %v1570, 0.0
          %v1635 = vmax.f32 %v1571, 0.0
          %v1636 = vmax.f32 %v1572, 0.0
          %v1637 = vmax.f32 %v1573, 0.0
          %v1638 = vmax.f32 %v1574, 0.0
          %v1639 = vmax.f32 %v1575, 0.0
          %v1640 = vmax.f32 %v1576, 0.0
          %v1641 = vmax.f32 %v1577, 0.0
          %v1642 = vmax.f32 %v1578, 0.0
          %v1643 = vmax.f32 %v1579, 0.0
          %v1644 = vmax.f32 %v1580, 0.0
          %v1645 = vmax.f32 %v1581, 0.0
          %v1646 = vmax.f32 %v1582, 0.0
          %v1647 = vmax.f32 %v1583, 0.0
          %v1648 = vmax.f32 %v1584, 0.0
          %v1649 = vmax.f32 %v1585, 0.0
          %v1650 = vmax.f32 %v1586, 0.0
          %v1651 = vmax.f32 %v1587, 0.0
          %v1652 = vmax.f32 %v1588, 0.0
          %v1653 = vmax.f32 %v1589, 0.0
          %v1654 = vmax.f32 %v1590, 0.0
          %v1655 = vmax.f32 %v1591, 0.0
          %v1656 = vpack.c.bf16 %v1593, %v1592
          %v1657 = vpack.c.bf16 %v1595, %v1594
          %v1658 = vpack.c.bf16 %v1597, %v1596
          %v1659 = vpack.c.bf16 %v1599, %v1598
          %v1660 = vpack.c.bf16 %v1601, %v1600
          %v1661 = vpack.c.bf16 %v1603, %v1602
          %v1662 = vpack.c.bf16 %v1605, %v1604
          %v1663 = vpack.c.bf16 %v1607, %v1606
          %v1664 = vpack.c.bf16 %v1609, %v1608
          %v1665 = vpack.c.bf16 %v1611, %v1610
          %v1666 = vpack.c.bf16 %v1613, %v1612
          %v1667 = vpack.c.bf16 %v1615, %v1614
          %v1668 = vpack.c.bf16 %v1617, %v1616
          %v1669 = vpack.c.bf16 %v1619, %v1618
          %v1670 = vpack.c.bf16 %v1621, %v1620
          %v1671 = vpack.c.bf16 %v1623, %v1622
          %v1672 = vpack.c.bf16 %v1625, %v1624
          %v1673 = vpack.c.bf16 %v1627, %v1626
          %v1674 = vpack.c.bf16 %v1629, %v1628
          %v1675 = vpack.c.bf16 %v1631, %v1630
          %v1676 = vpack.c.bf16 %v1633, %v1632
          %v1677 = vpack.c.bf16 %v1635, %v1634
          %v1678 = vpack.c.bf16 %v1637, %v1636
          %v1679 = vpack.c.bf16 %v1639, %v1638
          %v1680 = vpack.c.bf16 %v1641, %v1640
          %v1681 = vpack.c.bf16 %v1643, %v1642
          %v1682 = vpack.c.bf16 %v1645, %v1644
          %v1683 = vpack.c.bf16 %v1647, %v1646
          %v1684 = vpack.c.bf16 %v1649, %v1648
          %v1685 = vpack.c.bf16 %v1651, %v1650
          %v1686 = vpack.c.bf16 %v1653, %v1652
          %v1687 = vpack.c.bf16 %v1655, %v1654
          %v1688 = vld [vmem:[#allocation12] sm:$0xff]
          %v1689 = vld [vmem:[#allocation12 + $0x8] sm:$0xff]
          %v1690 = vld [vmem:[#allocation12 + $0x10] sm:$0xff]
          %v1691 = vld [vmem:[#allocation12 + $0x18] sm:$0xff]
          %v1692 = vld [vmem:[#allocation12 + $0x20] sm:$0xff]
          %v1693 = vld [vmem:[#allocation12 + $0x28] sm:$0xff]
          %v1694 = vld [vmem:[#allocation12 + $0x30] sm:$0xff]
          %v1695 = vld [vmem:[#allocation12 + $0x38] sm:$0xff]
          %v1696 = vld [vmem:[#allocation12 + $0x40] sm:$0xff]
          %v1697 = vld [vmem:[#allocation12 + $0x48] sm:$0xff]
          %v1698 = vld [vmem:[#allocation12 + $0x50] sm:$0xff]
          %v1699 = vld [vmem:[#allocation12 + $0x58] sm:$0xff]
          %v1700 = vld [vmem:[#allocation12 + $0x60] sm:$0xff]
          %v1701 = vld [vmem:[#allocation12 + $0x68] sm:$0xff]
          %v1702 = vld [vmem:[#allocation12 + $0x70] sm:$0xff]
          %v1703 = vld [vmem:[#allocation12 + $0x78] sm:$0xff]
          %v1704 = vld [vmem:[%s6] sm:$0x3]
          %v1706 = vlaneseq
          %v1707 = vshrl.u32 %v1706, 7
          %v1708 = vsub.s32 0, %v1707
          %v1709 = vrot.slane %v1704, %v1708
          %v1710 = vlaneseq
          %v1711 = vshrl.u32 %v1710, 7
          %v1712 = vsub.s32 1, %v1711
          %v1713 = vrot.slane %v1704, %v1712
          %v1732 = vunpack.c.l.b16 %v1688
          %v1733 = vunpack.c.h.b16 %v1688
          %v1734 = vunpack.c.l.b16 %v1689
          %v1735 = vunpack.c.h.b16 %v1689
          %v1736 = vunpack.c.l.b16 %v1690
          %v1737 = vunpack.c.h.b16 %v1690
          %v1738 = vunpack.c.l.b16 %v1691
          %v1739 = vunpack.c.h.b16 %v1691
          %v1740 = vunpack.c.l.b16 %v1692
          %v1741 = vunpack.c.h.b16 %v1692
          %v1742 = vunpack.c.l.b16 %v1693
          %v1743 = vunpack.c.h.b16 %v1693
          %v1744 = vunpack.c.l.b16 %v1694
          %v1745 = vunpack.c.h.b16 %v1694
          %v1746 = vunpack.c.l.b16 %v1695
          %v1747 = vunpack.c.h.b16 %v1695
          %v1748 = vunpack.c.l.b16 %v1696
          %v1749 = vunpack.c.h.b16 %v1696
          %v1750 = vunpack.c.l.b16 %v1697
          %v1751 = vunpack.c.h.b16 %v1697
          %v1752 = vunpack.c.l.b16 %v1698
          %v1753 = vunpack.c.h.b16 %v1698
          %v1754 = vunpack.c.l.b16 %v1699
          %v1755 = vunpack.c.h.b16 %v1699
          %v1756 = vunpack.c.l.b16 %v1700
          %v1757 = vunpack.c.h.b16 %v1700
          %v1758 = vunpack.c.l.b16 %v1701
          %v1759 = vunpack.c.h.b16 %v1701
          %v1760 = vunpack.c.l.b16 %v1702
          %v1761 = vunpack.c.h.b16 %v1702
          %v1762 = vunpack.c.l.b16 %v1703
          %v1763 = vunpack.c.h.b16 %v1703
          %v1764 = vpack.c.b16 %v1734, %v1732
          %v1765 = vpack.c.b16 %v1735, %v1733
          %v1766 = vpack.c.b16 %v1738, %v1736
          %v1767 = vpack.c.b16 %v1739, %v1737
          %v1768 = vpack.c.b16 %v1742, %v1740
          %v1769 = vpack.c.b16 %v1743, %v1741
          %v1770 = vpack.c.b16 %v1746, %v1744
          %v1771 = vpack.c.b16 %v1747, %v1745
          %v1772 = vpack.c.b16 %v1750, %v1748
          %v1773 = vpack.c.b16 %v1751, %v1749
          %v1774 = vpack.c.b16 %v1754, %v1752
          %v1775 = vpack.c.b16 %v1755, %v1753
          %v1776 = vpack.c.b16 %v1758, %v1756
          %v1777 = vpack.c.b16 %v1759, %v1757
          %v1778 = vpack.c.b16 %v1762, %v1760
          %v1779 = vpack.c.b16 %v1763, %v1761
          %1796 = vmatprep.subr.bf16.mxu0 %v1765
          %1797 = vmatpush1.bf16.msra.mxu0 %v1764
          %1798 = vmatprep.subr.bf16.mxu0 %v1767
          %1799 = vmatpush1.bf16.msra.mxu0 %v1766
          %1800 = vmatprep.subr.bf16.mxu0 %v1769
          %1801 = vmatpush1.bf16.msra.mxu0 %v1768
          %1802 = vmatprep.subr.bf16.mxu0 %v1771
          %1803 = vmatpush1.bf16.msra.mxu0 %v1770
          %1804 = vmatprep.subr.bf16.mxu0 %v1773
          %1805 = vmatpush1.bf16.msra.mxu0 %v1772
          %1806 = vmatprep.subr.bf16.mxu0 %v1775
          %1807 = vmatpush1.bf16.msra.mxu0 %v1774
          %1808 = vmatprep.subr.bf16.mxu0 %v1777
          %1809 = vmatpush1.bf16.msra.mxu0 %v1776
          %1810 = vmatprep.subr.bf16.mxu0 %v1779
          %1811 = vmatpush1.bf16.msra.mxu0 %v1778
          %1812 = vmatprep.subr.bf16.mxu0 0
          %1813 = vmatpush1.bf16.msra.mxu0 0
          %1814 = vmatprep.subr.bf16.mxu0 0
          %1815 = vmatpush1.bf16.msra.mxu0 0
          %1816 = vmatprep.subr.bf16.mxu0 0
          %1817 = vmatpush1.bf16.msra.mxu0 0
          %1818 = vmatprep.subr.bf16.mxu0 0
          %1819 = vmatpush1.bf16.msra.mxu0 0
          %1820 = vmatprep.subr.bf16.mxu0 0
          %1821 = vmatpush1.bf16.msra.mxu0 0
          %1822 = vmatprep.subr.bf16.mxu0 0
          %1823 = vmatpush1.bf16.msra.mxu0 0
          %1824 = vmatprep.subr.bf16.mxu0 0
          %1825 = vmatpush1.bf16.msra.mxu0 0
          %1826 = vmatprep.subr.bf16.mxu0 0
          %1827 = vmatpush1.bf16.msra.mxu0 0
          %1828 = vmatprep.mubr.bf16.mxu0 0
          %1829 = vmatmul.mubr.bf16.gmra.mrb[0].mxu0 %v1656
          %v1830 = vpop.f32.mrb[0].mxu0
          %v1831 = vadd.f32 %v1709, %v1830
          %v1832 = vpop.f32.mrb[0].mxu0
          %v1833 = vadd.f32 %v1713, %v1832
          %v1834 = vpop.f32.mrb[0].mxu0
          %v1835 = vadd.f32 %v1709, %v1834
          %v1836 = vpop.f32.mrb[0].mxu0
          %v1837 = vadd.f32 %v1713, %v1836
          %1838 = vmatprep.mubr.bf16.mxu0 0
          %1839 = vmatmul.mubr.bf16.gmra.mrb[0].mxu0 %v1657
          %v1840 = vpop.f32.mrb[0].mxu0
          %v1841 = vadd.f32 %v1709, %v1840
          %v1842 = vpop.f32.mrb[0].mxu0
          %v1843 = vadd.f32 %v1713, %v1842
          %v1844 = vpop.f32.mrb[0].mxu0
          %v1845 = vadd.f32 %v1709, %v1844
          %v1846 = vpop.f32.mrb[0].mxu0
          %v1847 = vadd.f32 %v1713, %v1846
          %1848 = vmatprep.mubr.bf16.mxu0 0
          %1849 = vmatmul.mubr.bf16.gmra.mrb[0].mxu0 %v1658
          %v1850 = vpop.f32.mrb[0].mxu0
          %v1851 = vadd.f32 %v1709, %v1850
          %v1852 = vpop.f32.mrb[0].mxu0
          %v1853 = vadd.f32 %v1713, %v1852
          %v1854 = vpop.f32.mrb[0].mxu0
          %v1855 = vadd.f32 %v1709, %v1854
          %v1856 = vpop.f32.mrb[0].mxu0
          %v1857 = vadd.f32 %v1713, %v1856
          %1858 = vmatprep.mubr.bf16.mxu0 0
          %1859 = vmatmul.mubr.bf16.gmra.mrb[0].mxu0 %v1659
          %v1860 = vpop.f32.mrb[0].mxu0
          %v1861 = vadd.f32 %v1709, %v1860
          %v1862 = vpop.f32.mrb[0].mxu0
          %v1863 = vadd.f32 %v1713, %v1862
          %v1864 = vpop.f32.mrb[0].mxu0
          %v1865 = vadd.f32 %v1709, %v1864
          %v1866 = vpop.f32.mrb[0].mxu0
          %v1867 = vadd.f32 %v1713, %v1866
          %1868 = vmatprep.mubr.bf16.mxu0 0
          %1869 = vmatmul.mubr.bf16.gmra.mrb[0].mxu0 %v1660
          %v1870 = vpop.f32.mrb[0].mxu0
          %v1871 = vadd.f32 %v1709, %v1870
          %v1872 = vpop.f32.mrb[0].mxu0
          %v1873 = vadd.f32 %v1713, %v1872
          %v1874 = vpop.f32.mrb[0].mxu0
          %v1875 = vadd.f32 %v1709, %v1874
          %v1876 = vpop.f32.mrb[0].mxu0
          %v1877 = vadd.f32 %v1713, %v1876
          %1878 = vmatprep.mubr.bf16.mxu0 0
          %1879 = vmatmul.mubr.bf16.gmra.mrb[0].mxu0 %v1661
          %v1880 = vpop.f32.mrb[0].mxu0
          %v1881 = vadd.f32 %v1709, %v1880
          %v1882 = vpop.f32.mrb[0].mxu0
          %v1883 = vadd.f32 %v1713, %v1882
          %v1884 = vpop.f32.mrb[0].mxu0
          %v1885 = vadd.f32 %v1709, %v1884
          %v1886 = vpop.f32.mrb[0].mxu0
          %v1887 = vadd.f32 %v1713, %v1886
          %1888 = vmatprep.mubr.bf16.mxu0 0
          %1889 = vmatmul.mubr.bf16.gmra.mrb[0].mxu0 %v1662
          %v1890 = vpop.f32.mrb[0].mxu0
          %v1891 = vadd.f32 %v1709, %v1890
          %v1892 = vpop.f32.mrb[0].mxu0
          %v1893 = vadd.f32 %v1713, %v1892
          %v1894 = vpop.f32.mrb[0].mxu0
          %v1895 = vadd.f32 %v1709, %v1894
          %v1896 = vpop.f32.mrb[0].mxu0
          %v1897 = vadd.f32 %v1713, %v1896
          %1898 = vmatprep.mubr.bf16.mxu0 0
          %1899 = vmatmul.mubr.bf16.gmra.mrb[0].mxu0 %v1663
          %v1900 = vpop.f32.mrb[0].mxu0
          %v1901 = vadd.f32 %v1709, %v1900
          %v1902 = vpop.f32.mrb[0].mxu0
          %v1903 = vadd.f32 %v1713, %v1902
          %v1904 = vpop.f32.mrb[0].mxu0
          %v1905 = vadd.f32 %v1709, %v1904
          %v1906 = vpop.f32.mrb[0].mxu0
          %v1907 = vadd.f32 %v1713, %v1906
          %1908 = vmatprep.mubr.bf16.mxu0 0
          %1909 = vmatmul.mubr.bf16.gmra.mrb[0].mxu0 %v1664
          %v1910 = vpop.f32.mrb[0].mxu0
          %v1911 = vadd.f32 %v1709, %v1910
          %v1912 = vpop.f32.mrb[0].mxu0
          %v1913 = vadd.f32 %v1713, %v1912
          %v1914 = vpop.f32.mrb[0].mxu0
          %v1915 = vadd.f32 %v1709, %v1914
          %v1916 = vpop.f32.mrb[0].mxu0
          %v1917 = vadd.f32 %v1713, %v1916
          %1918 = vmatprep.mubr.bf16.mxu0 0
          %1919 = vmatmul.mubr.bf16.gmra.mrb[0].mxu0 %v1665
          %v1920 = vpop.f32.mrb[0].mxu0
          %v1921 = vadd.f32 %v1709, %v1920
          %v1922 = vpop.f32.mrb[0].mxu0
          %v1923 = vadd.f32 %v1713, %v1922
          %v1924 = vpop.f32.mrb[0].mxu0
          %v1925 = vadd.f32 %v1709, %v1924
          %v1926 = vpop.f32.mrb[0].mxu0
          %v1927 = vadd.f32 %v1713, %v1926
          %1928 = vmatprep.mubr.bf16.mxu0 0
          %1929 = vmatmul.mubr.bf16.gmra.mrb[0].mxu0 %v1666
          %v1930 = vpop.f32.mrb[0].mxu0
          %v1931 = vadd.f32 %v1709, %v1930
          %v1932 = vpop.f32.mrb[0].mxu0
          %v1933 = vadd.f32 %v1713, %v1932
          %v1934 = vpop.f32.mrb[0].mxu0
          %v1935 = vadd.f32 %v1709, %v1934
          %v1936 = vpop.f32.mrb[0].mxu0
          %v1937 = vadd.f32 %v1713, %v1936
          %1938 = vmatprep.mubr.bf16.mxu0 0
          %1939 = vmatmul.mubr.bf16.gmra.mrb[0].mxu0 %v1667
          %v1940 = vpop.f32.mrb[0].mxu0
          %v1941 = vadd.f32 %v1709, %v1940
          %v1942 = vpop.f32.mrb[0].mxu0
          %v1943 = vadd.f32 %v1713, %v1942
          %v1944 = vpop.f32.mrb[0].mxu0
          %v1945 = vadd.f32 %v1709, %v1944
          %v1946 = vpop.f32.mrb[0].mxu0
          %v1947 = vadd.f32 %v1713, %v1946
          %1948 = vmatprep.mubr.bf16.mxu0 0
          %1949 = vmatmul.mubr.bf16.gmra.mrb[0].mxu0 %v1668
          %v1950 = vpop.f32.mrb[0].mxu0
          %v1951 = vadd.f32 %v1709, %v1950
          %v1952 = vpop.f32.mrb[0].mxu0
          %v1953 = vadd.f32 %v1713, %v1952
          %v1954 = vpop.f32.mrb[0].mxu0
          %v1955 = vadd.f32 %v1709, %v1954
          %v1956 = vpop.f32.mrb[0].mxu0
          %v1957 = vadd.f32 %v1713, %v1956
          %1958 = vmatprep.mubr.bf16.mxu0 0
          %1959 = vmatmul.mubr.bf16.gmra.mrb[0].mxu0 %v1669
          %v1960 = vpop.f32.mrb[0].mxu0
          %v1961 = vadd.f32 %v1709, %v1960
          %v1962 = vpop.f32.mrb[0].mxu0
          %v1963 = vadd.f32 %v1713, %v1962
          %v1964 = vpop.f32.mrb[0].mxu0
          %v1965 = vadd.f32 %v1709, %v1964
          %v1966 = vpop.f32.mrb[0].mxu0
          %v1967 = vadd.f32 %v1713, %v1966
          %1968 = vmatprep.mubr.bf16.mxu0 0
          %1969 = vmatmul.mubr.bf16.gmra.mrb[0].mxu0 %v1670
          %v1970 = vpop.f32.mrb[0].mxu0
          %v1971 = vadd.f32 %v1709, %v1970
          %v1972 = vpop.f32.mrb[0].mxu0
          %v1973 = vadd.f32 %v1713, %v1972
          %v1974 = vpop.f32.mrb[0].mxu0
          %v1975 = vadd.f32 %v1709, %v1974
          %v1976 = vpop.f32.mrb[0].mxu0
          %v1977 = vadd.f32 %v1713, %v1976
          %1978 = vmatprep.mubr.bf16.mxu0 0
          %1979 = vmatmul.mubr.bf16.gmra.mrb[0].mxu0 %v1671
          %v1980 = vpop.f32.mrb[0].mxu0
          %v1981 = vadd.f32 %v1709, %v1980
          %v1982 = vpop.f32.mrb[0].mxu0
          %v1983 = vadd.f32 %v1713, %v1982
          %v1984 = vpop.f32.mrb[0].mxu0
          %v1985 = vadd.f32 %v1709, %v1984
          %v1986 = vpop.f32.mrb[0].mxu0
          %v1987 = vadd.f32 %v1713, %v1986
          %1988 = vmatprep.mubr.bf16.mxu0 0
          %1989 = vmatmul.mubr.bf16.gmra.mrb[0].mxu0 %v1672
          %v1990 = vpop.f32.mrb[0].mxu0
          %v1991 = vadd.f32 %v1709, %v1990
          %v1992 = vpop.f32.mrb[0].mxu0
          %v1993 = vadd.f32 %v1713, %v1992
          %v1994 = vpop.f32.mrb[0].mxu0
          %v1995 = vadd.f32 %v1709, %v1994
          %v1996 = vpop.f32.mrb[0].mxu0
          %v1997 = vadd.f32 %v1713, %v1996
          %1998 = vmatprep.mubr.bf16.mxu0 0
          %1999 = vmatmul.mubr.bf16.gmra.mrb[0].mxu0 %v1673
          %v2000 = vpop.f32.mrb[0].mxu0
          %v2001 = vadd.f32 %v1709, %v2000
          %v2002 = vpop.f32.mrb[0].mxu0
          %v2003 = vadd.f32 %v1713, %v2002
          %v2004 = vpop.f32.mrb[0].mxu0
          %v2005 = vadd.f32 %v1709, %v2004
          %v2006 = vpop.f32.mrb[0].mxu0
          %v2007 = vadd.f32 %v1713, %v2006
          %2008 = vmatprep.mubr.bf16.mxu0 0
          %2009 = vmatmul.mubr.bf16.gmra.mrb[0].mxu0 %v1674
          %v2010 = vpop.f32.mrb[0].mxu0
          %v2011 = vadd.f32 %v1709, %v2010
          %v2012 = vpop.f32.mrb[0].mxu0
          %v2013 = vadd.f32 %v1713, %v2012
          %v2014 = vpop.f32.mrb[0].mxu0
          %v2015 = vadd.f32 %v1709, %v2014
          %v2016 = vpop.f32.mrb[0].mxu0
          %v2017 = vadd.f32 %v1713, %v2016
          %2018 = vmatprep.mubr.bf16.mxu0 0
          %2019 = vmatmul.mubr.bf16.gmra.mrb[0].mxu0 %v1675
          %v2020 = vpop.f32.mrb[0].mxu0
          %v2021 = vadd.f32 %v1709, %v2020
          %v2022 = vpop.f32.mrb[0].mxu0
          %v2023 = vadd.f32 %v1713, %v2022
          %v2024 = vpop.f32.mrb[0].mxu0
          %v2025 = vadd.f32 %v1709, %v2024
          %v2026 = vpop.f32.mrb[0].mxu0
          %v2027 = vadd.f32 %v1713, %v2026
          %2028 = vmatprep.mubr.bf16.mxu0 0
          %2029 = vmatmul.mubr.bf16.gmra.mrb[0].mxu0 %v1676
          %v2030 = vpop.f32.mrb[0].mxu0
          %v2031 = vadd.f32 %v1709, %v2030
          %v2032 = vpop.f32.mrb[0].mxu0
          %v2033 = vadd.f32 %v1713, %v2032
          %v2034 = vpop.f32.mrb[0].mxu0
          %v2035 = vadd.f32 %v1709, %v2034
          %v2036 = vpop.f32.mrb[0].mxu0
          %v2037 = vadd.f32 %v1713, %v2036
          %2038 = vmatprep.mubr.bf16.mxu0 0
          %2039 = vmatmul.mubr.bf16.gmra.mrb[0].mxu0 %v1677
          %v2040 = vpop.f32.mrb[0].mxu0
          %v2041 = vadd.f32 %v1709, %v2040
          %v2042 = vpop.f32.mrb[0].mxu0
          %v2043 = vadd.f32 %v1713, %v2042
          %v2044 = vpop.f32.mrb[0].mxu0
          %v2045 = vadd.f32 %v1709, %v2044
          %v2046 = vpop.f32.mrb[0].mxu0
          %v2047 = vadd.f32 %v1713, %v2046
          %2048 = vmatprep.mubr.bf16.mxu0 0
          %2049 = vmatmul.mubr.bf16.gmra.mrb[0].mxu0 %v1678
          %v2050 = vpop.f32.mrb[0].mxu0
          %v2051 = vadd.f32 %v1709, %v2050
          %v2052 = vpop.f32.mrb[0].mxu0
          %v2053 = vadd.f32 %v1713, %v2052
          %v2054 = vpop.f32.mrb[0].mxu0
          %v2055 = vadd.f32 %v1709, %v2054
          %v2056 = vpop.f32.mrb[0].mxu0
          %v2057 = vadd.f32 %v1713, %v2056
          %2058 = vmatprep.mubr.bf16.mxu0 0
          %2059 = vmatmul.mubr.bf16.gmra.mrb[0].mxu0 %v1679
          %v2060 = vpop.f32.mrb[0].mxu0
          %v2061 = vadd.f32 %v1709, %v2060
          %v2062 = vpop.f32.mrb[0].mxu0
          %v2063 = vadd.f32 %v1713, %v2062
          %v2064 = vpop.f32.mrb[0].mxu0
          %v2065 = vadd.f32 %v1709, %v2064
          %v2066 = vpop.f32.mrb[0].mxu0
          %v2067 = vadd.f32 %v1713, %v2066
          %2068 = vmatprep.mubr.bf16.mxu0 0
          %2069 = vmatmul.mubr.bf16.gmra.mrb[0].mxu0 %v1680
          %v2070 = vpop.f32.mrb[0].mxu0
          %v2071 = vadd.f32 %v1709, %v2070
          %v2072 = vpop.f32.mrb[0].mxu0
          %v2073 = vadd.f32 %v1713, %v2072
          %v2074 = vpop.f32.mrb[0].mxu0
          %v2075 = vadd.f32 %v1709, %v2074
          %v2076 = vpop.f32.mrb[0].mxu0
          %v2077 = vadd.f32 %v1713, %v2076
          %2078 = vmatprep.mubr.bf16.mxu0 0
          %2079 = vmatmul.mubr.bf16.gmra.mrb[0].mxu0 %v1681
          %v2080 = vpop.f32.mrb[0].mxu0
          %v2081 = vadd.f32 %v1709, %v2080
          %v2082 = vpop.f32.mrb[0].mxu0
          %v2083 = vadd.f32 %v1713, %v2082
          %v2084 = vpop.f32.mrb[0].mxu0
          %v2085 = vadd.f32 %v1709, %v2084
          %v2086 = vpop.f32.mrb[0].mxu0
          %v2087 = vadd.f32 %v1713, %v2086
          %2088 = vmatprep.mubr.bf16.mxu0 0
          %2089 = vmatmul.mubr.bf16.gmra.mrb[0].mxu0 %v1682
          %v2090 = vpop.f32.mrb[0].mxu0
          %v2091 = vadd.f32 %v1709, %v2090
          %v2092 = vpop.f32.mrb[0].mxu0
          %v2093 = vadd.f32 %v1713, %v2092
          %v2094 = vpop.f32.mrb[0].mxu0
          %v2095 = vadd.f32 %v1709, %v2094
          %v2096 = vpop.f32.mrb[0].mxu0
          %v2097 = vadd.f32 %v1713, %v2096
          %2098 = vmatprep.mubr.bf16.mxu0 0
          %2099 = vmatmul.mubr.bf16.gmra.mrb[0].mxu0 %v1683
          %v2100 = vpop.f32.mrb[0].mxu0
          %v2101 = vadd.f32 %v1709, %v2100
          %v2102 = vpop.f32.mrb[0].mxu0
          %v2103 = vadd.f32 %v1713, %v2102
          %v2104 = vpop.f32.mrb[0].mxu0
          %v2105 = vadd.f32 %v1709, %v2104
          %v2106 = vpop.f32.mrb[0].mxu0
          %v2107 = vadd.f32 %v1713, %v2106
          %2108 = vmatprep.mubr.bf16.mxu0 0
          %2109 = vmatmul.mubr.bf16.gmra.mrb[0].mxu0 %v1684
          %v2110 = vpop.f32.mrb[0].mxu0
          %v2111 = vadd.f32 %v1709, %v2110
          %v2112 = vpop.f32.mrb[0].mxu0
          %v2113 = vadd.f32 %v1713, %v2112
          %v2114 = vpop.f32.mrb[0].mxu0
          %v2115 = vadd.f32 %v1709, %v2114
          %v2116 = vpop.f32.mrb[0].mxu0
          %v2117 = vadd.f32 %v1713, %v2116
          %2118 = vmatprep.mubr.bf16.mxu0 0
          %2119 = vmatmul.mubr.bf16.gmra.mrb[0].mxu0 %v1685
          %v2120 = vpop.f32.mrb[0].mxu0
          %v2121 = vadd.f32 %v1709, %v2120
          %v2122 = vpop.f32.mrb[0].mxu0
          %v2123 = vadd.f32 %v1713, %v2122
          %v2124 = vpop.f32.mrb[0].mxu0
          %v2125 = vadd.f32 %v1709, %v2124
          %v2126 = vpop.f32.mrb[0].mxu0
          %v2127 = vadd.f32 %v1713, %v2126
          %2128 = vmatprep.mubr.bf16.mxu0 0
          %2129 = vmatmul.mubr.bf16.gmra.mrb[0].mxu0 %v1686
          %v2130 = vpop.f32.mrb[0].mxu0
          %v2131 = vadd.f32 %v1709, %v2130
          %v2132 = vpop.f32.mrb[0].mxu0
          %v2133 = vadd.f32 %v1713, %v2132
          %v2134 = vpop.f32.mrb[0].mxu0
          %v2135 = vadd.f32 %v1709, %v2134
          %v2136 = vpop.f32.mrb[0].mxu0
          %v2137 = vadd.f32 %v1713, %v2136
          %2138 = vmatprep.mubr.bf16.mxu0 0
          %2139 = vmatmul.mubr.bf16.gmra.mrb[0].mxu0 %v1687
          %v2140 = vpop.f32.mrb[0].mxu0
          %v2141 = vadd.f32 %v1709, %v2140
          %v2142 = vpop.f32.mrb[0].mxu0
          %v2143 = vadd.f32 %v1713, %v2142
          %v2144 = vpop.f32.mrb[0].mxu0
          %v2145 = vadd.f32 %v1709, %v2144
          %v2146 = vpop.f32.mrb[0].mxu0
          %v2147 = vadd.f32 %v1713, %v2146
          %2148 = vdwg.mxu0
          %2149 = vst [vmem:[%s349] sm:$0xff] %v1831
          %2150 = vst [vmem:[%s349 + $0x8] sm:$0xff] %v1833
          %2151 = vst [vmem:[%s349 + $0x10] sm:$0xff] %v1835
          %2152 = vst [vmem:[%s349 + $0x18] sm:$0xff] %v1837
          %2153 = vst [vmem:[%s349 + $0x20] sm:$0xff] %v1841
          %2154 = vst [vmem:[%s349 + $0x28] sm:$0xff] %v1843
          %2155 = vst [vmem:[%s349 + $0x30] sm:$0xff] %v1845
          %2156 = vst [vmem:[%s349 + $0x38] sm:$0xff] %v1847
          %2157 = vst [vmem:[%s349 + $0x40] sm:$0xff] %v1851
          %2158 = vst [vmem:[%s349 + $0x48] sm:$0xff] %v1853
          %2159 = vst [vmem:[%s349 + $0x50] sm:$0xff] %v1855
          %2160 = vst [vmem:[%s349 + $0x58] sm:$0xff] %v1857
          %2161 = vst [vmem:[%s349 + $0x60] sm:$0xff] %v1861
          %2162 = vst [vmem:[%s349 + $0x68] sm:$0xff] %v1863
          %2163 = vst [vmem:[%s349 + $0x70] sm:$0xff] %v1865
          %2164 = vst [vmem:[%s349 + $0x78] sm:$0xff] %v1867
          %2165 = vst [vmem:[%s349 + $0x80] sm:$0xff] %v1871
          %2166 = vst [vmem:[%s349 + $0x88] sm:$0xff] %v1873
          %2167 = vst [vmem:[%s349 + $0x90] sm:$0xff] %v1875
          %2168 = vst [vmem:[%s349 + $0x98] sm:$0xff] %v1877
          %2169 = vst [vmem:[%s349 + $0xa0] sm:$0xff] %v1881
          %2170 = vst [vmem:[%s349 + $0xa8] sm:$0xff] %v1883
          %2171 = vst [vmem:[%s349 + $0xb0] sm:$0xff] %v1885
          %2172 = vst [vmem:[%s349 + $0xb8] sm:$0xff] %v1887
          %2173 = vst [vmem:[%s349 + $0xc0] sm:$0xff] %v1891
          %2174 = vst [vmem:[%s349 + $0xc8] sm:$0xff] %v1893
          %2175 = vst [vmem:[%s349 + $0xd0] sm:$0xff] %v1895
          %2176 = vst [vmem:[%s349 + $0xd8] sm:$0xff] %v1897
          %2177 = vst [vmem:[%s349 + $0xe0] sm:$0xff] %v1901
          %2178 = vst [vmem:[%s349 + $0xe8] sm:$0xff] %v1903
          %2179 = vst [vmem:[%s349 + $0xf0] sm:$0xff] %v1905
          %2180 = vst [vmem:[%s349 + $0xf8] sm:$0xff] %v1907
          %2181 = vst [vmem:[%s349 + $0x100] sm:$0xff] %v1911
          %2182 = vst [vmem:[%s349 + $0x108] sm:$0xff] %v1913
          %2183 = vst [vmem:[%s349 + $0x110] sm:$0xff] %v1915
          %2184 = vst [vmem:[%s349 + $0x118] sm:$0xff] %v1917
          %2185 = vst [vmem:[%s349 + $0x120] sm:$0xff] %v1921
          %2186 = vst [vmem:[%s349 + $0x128] sm:$0xff] %v1923
          %2187 = vst [vmem:[%s349 + $0x130] sm:$0xff] %v1925
          %2188 = vst [vmem:[%s349 + $0x138] sm:$0xff] %v1927
          %2189 = vst [vmem:[%s349 + $0x140] sm:$0xff] %v1931
          %2190 = vst [vmem:[%s349 + $0x148] sm:$0xff] %v1933
          %2191 = vst [vmem:[%s349 + $0x150] sm:$0xff] %v1935
          %2192 = vst [vmem:[%s349 + $0x158] sm:$0xff] %v1937
          %2193 = vst [vmem:[%s349 + $0x160] sm:$0xff] %v1941
          %2194 = vst [vmem:[%s349 + $0x168] sm:$0xff] %v1943
          %2195 = vst [vmem:[%s349 + $0x170] sm:$0xff] %v1945
          %2196 = vst [vmem:[%s349 + $0x178] sm:$0xff] %v1947
          %2197 = vst [vmem:[%s349 + $0x180] sm:$0xff] %v1951
          %2198 = vst [vmem:[%s349 + $0x188] sm:$0xff] %v1953
          %2199 = vst [vmem:[%s349 + $0x190] sm:$0xff] %v1955
          %2200 = vst [vmem:[%s349 + $0x198] sm:$0xff] %v1957
          %2201 = vst [vmem:[%s349 + $0x1a0] sm:$0xff] %v1961
          %2202 = vst [vmem:[%s349 + $0x1a8] sm:$0xff] %v1963
          %2203 = vst [vmem:[%s349 + $0x1b0] sm:$0xff] %v1965
          %2204 = vst [vmem:[%s349 + $0x1b8] sm:$0xff] %v1967
          %2205 = vst [vmem:[%s349 + $0x1c0] sm:$0xff] %v1971
          %2206 = vst [vmem:[%s349 + $0x1c8] sm:$0xff] %v1973
          %2207 = vst [vmem:[%s349 + $0x1d0] sm:$0xff] %v1975
          %2208 = vst [vmem:[%s349 + $0x1d8] sm:$0xff] %v1977
          %2209 = vst [vmem:[%s349 + $0x1e0] sm:$0xff] %v1981
          %2210 = vst [vmem:[%s349 + $0x1e8] sm:$0xff] %v1983
          %2211 = vst [vmem:[%s349 + $0x1f0] sm:$0xff] %v1985
          %2212 = vst [vmem:[%s349 + $0x1f8] sm:$0xff] %v1987
          %2213 = vst [vmem:[%s349 + $0x200] sm:$0xff] %v1991
          %2214 = vst [vmem:[%s349 + $0x208] sm:$0xff] %v1993
          %2215 = vst [vmem:[%s349 + $0x210] sm:$0xff] %v1995
          %2216 = vst [vmem:[%s349 + $0x218] sm:$0xff] %v1997
          %2217 = vst [vmem:[%s349 + $0x220] sm:$0xff] %v2001
          %2218 = vst [vmem:[%s349 + $0x228] sm:$0xff] %v2003
          %2219 = vst [vmem:[%s349 + $0x230] sm:$0xff] %v2005
          %2220 = vst [vmem:[%s349 + $0x238] sm:$0xff] %v2007
          %2221 = vst [vmem:[%s349 + $0x240] sm:$0xff] %v2011
          %2222 = vst [vmem:[%s349 + $0x248] sm:$0xff] %v2013
          %2223 = vst [vmem:[%s349 + $0x250] sm:$0xff] %v2015
          %2224 = vst [vmem:[%s349 + $0x258] sm:$0xff] %v2017
          %2225 = vst [vmem:[%s349 + $0x260] sm:$0xff] %v2021
          %2226 = vst [vmem:[%s349 + $0x268] sm:$0xff] %v2023
          %2227 = vst [vmem:[%s349 + $0x270] sm:$0xff] %v2025
          %2228 = vst [vmem:[%s349 + $0x278] sm:$0xff] %v2027
          %2229 = vst [vmem:[%s349 + $0x280] sm:$0xff] %v2031
          %2230 = vst [vmem:[%s349 + $0x288] sm:$0xff] %v2033
          %2231 = vst [vmem:[%s349 + $0x290] sm:$0xff] %v2035
          %2232 = vst [vmem:[%s349 + $0x298] sm:$0xff] %v2037
          %2233 = vst [vmem:[%s349 + $0x2a0] sm:$0xff] %v2041
          %2234 = vst [vmem:[%s349 + $0x2a8] sm:$0xff] %v2043
          %2235 = vst [vmem:[%s349 + $0x2b0] sm:$0xff] %v2045
          %2236 = vst [vmem:[%s349 + $0x2b8] sm:$0xff] %v2047
          %2237 = vst [vmem:[%s349 + $0x2c0] sm:$0xff] %v2051
          %2238 = vst [vmem:[%s349 + $0x2c8] sm:$0xff] %v2053
          %2239 = vst [vmem:[%s349 + $0x2d0] sm:$0xff] %v2055
          %2240 = vst [vmem:[%s349 + $0x2d8] sm:$0xff] %v2057
          %2241 = vst [vmem:[%s349 + $0x2e0] sm:$0xff] %v2061
          %2242 = vst [vmem:[%s349 + $0x2e8] sm:$0xff] %v2063
          %2243 = vst [vmem:[%s349 + $0x2f0] sm:$0xff] %v2065
          %2244 = vst [vmem:[%s349 + $0x2f8] sm:$0xff] %v2067
          %2245 = vst [vmem:[%s349 + $0x300] sm:$0xff] %v2071
          %2246 = vst [vmem:[%s349 + $0x308] sm:$0xff] %v2073
          %2247 = vst [vmem:[%s349 + $0x310] sm:$0xff] %v2075
          %2248 = vst [vmem:[%s349 + $0x318] sm:$0xff] %v2077
          %2249 = vst [vmem:[%s349 + $0x320] sm:$0xff] %v2081
          %2250 = vst [vmem:[%s349 + $0x328] sm:$0xff] %v2083
          %2251 = vst [vmem:[%s349 + $0x330] sm:$0xff] %v2085
          %2252 = vst [vmem:[%s349 + $0x338] sm:$0xff] %v2087
          %2253 = vst [vmem:[%s349 + $0x340] sm:$0xff] %v2091
          %2254 = vst [vmem:[%s349 + $0x348] sm:$0xff] %v2093
          %2255 = vst [vmem:[%s349 + $0x350] sm:$0xff] %v2095
          %2256 = vst [vmem:[%s349 + $0x358] sm:$0xff] %v2097
          %2257 = vst [vmem:[%s349 + $0x360] sm:$0xff] %v2101
          %2258 = vst [vmem:[%s349 + $0x368] sm:$0xff] %v2103
          %2259 = vst [vmem:[%s349 + $0x370] sm:$0xff] %v2105
          %2260 = vst [vmem:[%s349 + $0x378] sm:$0xff] %v2107
          %2261 = vst [vmem:[%s349 + $0x380] sm:$0xff] %v2111
          %2262 = vst [vmem:[%s349 + $0x388] sm:$0xff] %v2113
          %2263 = vst [vmem:[%s349 + $0x390] sm:$0xff] %v2115
          %2264 = vst [vmem:[%s349 + $0x398] sm:$0xff] %v2117
          %2265 = vst [vmem:[%s349 + $0x3a0] sm:$0xff] %v2121
          %2266 = vst [vmem:[%s349 + $0x3a8] sm:$0xff] %v2123
          %2267 = vst [vmem:[%s349 + $0x3b0] sm:$0xff] %v2125
          %2268 = vst [vmem:[%s349 + $0x3b8] sm:$0xff] %v2127
          %2269 = vst [vmem:[%s349 + $0x3c0] sm:$0xff] %v2131
          %2270 = vst [vmem:[%s349 + $0x3c8] sm:$0xff] %v2133
          %2271 = vst [vmem:[%s349 + $0x3d0] sm:$0xff] %v2135
          %2272 = vst [vmem:[%s349 + $0x3d8] sm:$0xff] %v2137
          %2273 = vst [vmem:[%s349 + $0x3e0] sm:$0xff] %v2141
          %2274 = vst [vmem:[%s349 + $0x3e8] sm:$0xff] %v2143
          %2275 = vst [vmem:[%s349 + $0x3f0] sm:$0xff] %v2145
          %2276 = vst [vmem:[%s349 + $0x3f8] sm:$0xff] %v2147
        $region76: #{tpu_custom_call.1} parent=47 // pred_fallthru
          _
        %s2277 = sand.u32 %s205, 1
        %s2278 = scalar_lea.sflag [#allocation9], %s2277
        %s2279 = sand.u32 %s205, 1
        %s2280 = smul.addr %s2279, 1024
        %s2281 = scalar_lea.vmem [#allocation13], %s2280
        // Predicated region
        $region77: #{tpu_custom_call.1} parent=47 // pred_check
          %p2282 = pneg %p215
        $region78: #{tpu_custom_call.1} parent=47 // pred_check_branch
          %2284 = sbr.rel (%p2282) target = $region80
        $region79: #{tpu_custom_call.1} parent=47 // pred_region
          %s2285 = smul.u32 %s29, %s30
          %s2286 = smul.u32 64, %s2285
          %s2288 = ssub.s32 16384, 16384
          %2289 = vsyncadd %s2278, %s2288
          %s2290 = smul.addr %s2286, 2
          %s2291 = smul.addr %s2290, 128
          %s2292 = scalar_lea.hbm %s7, %s2291
          %s2293 = sshll.u32 %s2281, 4
          %s2294 = int_to_ptr.vmem [resolvable:$true] %s2293
          %2299 = dma.vmem_to_hbm [thread:$0]  %s2294, 16384, %s2292, %s2278, 256, 256, 16
        $region80: #{tpu_custom_call.1} parent=47 // pred_fallthru
          _
      $region48: #{tpu_custom_call.1} parent=5 // pred_fallthru
        _
      %p2300 = scmp.le.s32.totalorder 2, %s20
      // Predicated region
      $region81: #{tpu_custom_call.1} parent=5 // pred_check
        %p2301 = pneg %p2300
      $region82: #{tpu_custom_call.1} parent=5 // pred_check_branch
        %2303 = sbr.rel (%p2301) target = $region84
      $region83: #{tpu_custom_call.1} parent=5 // pred_region
        %s2304 = ssub.s32 %s20, 2
        // Predicated region
        $region85: #{tpu_custom_call.1} parent=83 // pred_check
          %p2305 = pneg %p221
        $region86: #{tpu_custom_call.1} parent=83 // pred_check_branch
          %2307 = sbr.rel (%p2305) target = $region88
        $region87: #{tpu_custom_call.1} parent=83 // pred_region
          %s2308 = sand.u32 %s206, 1
          %s2309 = scalar_lea.sflag [#allocation9], %s2308
          %s2310 = sand.u32 %s206, 1
          %s2311 = smul.addr %s2310, 1024
          %s2312 = scalar_lea.vmem [#allocation13], %s2311
          %2313 = dma.done %s2309, 16384
        $region88: #{tpu_custom_call.1} parent=83 // pred_fallthru
          _
      $region84: #{tpu_custom_call.1} parent=5 // pred_fallthru
        _
    $region6: #{tpu_custom_call.1} parent=1 // loop_footer
      %s24 = sadd.s32 1, %s20
    $region7: #{tpu_custom_call.1} parent=1 // loop_footer_branch
      %19 = sbr.rel target = $region3
    $region8: #{tpu_custom_call.1} parent=1 // loop_exit
      _
    %2314 = vsyncpa [#allocation8], 1
    %s2315 = scalar_lea.sflag [#allocation8], 1
    %2316 = vsyncpa %s2315, 1
    %2317 = vsyncpa [#allocation11], 1
    %2318 = vsyncpa [#allocation9], 1
    %s2319 = scalar_lea.sflag [#allocation9], 1
    %2320 = vsyncpa %s2319, 1

</llo_original>
